<compile_context>
chip_gen: v5e
topology: v5e:2x2
jax: 0.10.0
libtpu: 0.0.40
codegen_flags: <defaults>
</compile_context>

<pallas_src>
import functools

import jax
import jax.numpy as jnp
import numpy as np
from jax.experimental import pallas as pl
from jax.experimental.pallas import tpu as pltpu

HIDDEN = 512


def _round_up(n, m):
    return ((n + m - 1) // m) * m


# ---------------------------------------------------------------------------
# Kernel
# ---------------------------------------------------------------------------
def vae_kernel(x_ref, eps_ref,
               w1_ref, b1_ref, w2_ref, b2_ref,
               wg_ref, bg_ref,
               wd1_ref, bd1_ref, wd2_ref, bd2_ref,
               wo_ref, bo_ref,
               mu_ref, var_ref, z_ref, sig_ref):
    f32 = jnp.float32
    cdt = w1_ref.dtype            # matmul compute dtype (bf16 by default)
    zp = mu_ref.shape[-1]         # lane-padded latent width

    x = x_ref[...]

    # ---- Encoder: Linear -> ReLU -> Linear -> ReLU ----
    h = jnp.dot(x.astype(cdt), w1_ref[...], preferred_element_type=f32) + b1_ref[...]
    h = jnp.maximum(h, 0.0)
    h = jnp.dot(h.astype(cdt), w2_ref[...], preferred_element_type=f32) + b2_ref[...]
    h = jnp.maximum(h, 0.0)

    # ---- Fused gaussian head: one matmul for [mu | logvar] ----
    g = jnp.dot(h.astype(cdt), wg_ref[...], preferred_element_type=f32) + bg_ref[...]
    mu = g[:, :zp]
    logvar = g[:, zp:]
    std = jnp.exp(0.5 * logvar)          # single EUP exp
    var = std * std                      # == exp(logvar)
    z = mu + std * eps_ref[...]          # reparameterization

    # ---- Decoder: Linear -> ReLU -> Linear -> (Linear + sigmoid) ----
    d = jnp.dot(z.astype(cdt), wd1_ref[...], preferred_element_type=f32) + bd1_ref[...]
    d = jnp.maximum(d, 0.0)
    d = jnp.dot(d.astype(cdt), wd2_ref[...], preferred_element_type=f32) + bd2_ref[...]
    # NOTE: module list has no ReLU after the second decoder Linear.
    logits = jnp.dot(d.astype(cdt), wo_ref[...], preferred_element_type=f32) + bo_ref[...]
    sig = pl.reciprocal(1.0 + jnp.exp(-logits), approx=True)   # sigmoid on EUP

    mu_ref[...] = mu
    var_ref[...] = var
    z_ref[...] = z
    sig_ref[...] = sig


# ---------------------------------------------------------------------------
# Parameter handling
# ---------------------------------------------------------------------------
def init_params(key, x_dim, z_dim, hidden=HIDDEN):
    """Deterministic parameter init. Weights [in, out], biases [1, out] (f32)."""
    def lin(k, fan_in, fan_out):
        kw, kb = jax.random.split(k)
        w = jax.random.normal(kw, (fan_in, fan_out), jnp.float32) * 0.05
        b = jax.random.normal(kb, (1, fan_out), jnp.float32) * 0.01
        return w, b

    keys = jax.random.split(key, 7)
    w1, b1 = lin(keys[0], x_dim, hidden)     # enc Linear(x_dim, 512)
    w2, b2 = lin(keys[1], hidden, hidden)    # enc Linear(512, 512)
    wmu, bmu = lin(keys[2], hidden, z_dim)   # gaussian mu head
    wlv, blv = lin(keys[3], hidden, z_dim)   # gaussian logvar head
    wd1, bd1 = lin(keys[4], z_dim, hidden)   # dec Linear(z_dim, 512)
    wd2, bd2 = lin(keys[5], hidden, hidden)  # dec Linear(512, 512)
    wo, bo = lin(keys[6], hidden, x_dim)     # cBernoulli sigmoid head
    return (w1, b1, w2, b2, wmu, bmu, wlv, blv,
            wd1, bd1, wd2, bd2, wo, bo)


def prepare_params(params, x_dim, z_dim, hidden=HIDDEN,
                   compute_dtype=jnp.bfloat16):
    """Pad feature dims to multiples of 128, fuse mu/logvar heads, cast
    matmul weights to `compute_dtype` (biases stay f32)."""
    (w1, b1, w2, b2, wmu, bmu, wlv, blv,
     wd1, bd1, wd2, bd2, wo, bo) = params
    xp = _round_up(x_dim, 128)
    zp = _round_up(z_dim, 128)

    def pad_w(w, rows, cols):
        return jnp.zeros((rows, cols), jnp.float32).at[:w.shape[0], :w.shape[1]].set(w)

    def pad_b(b, cols):
        return jnp.zeros((1, cols), jnp.float32).at[:, :b.shape[1]].set(b)

    w1p, b1p = pad_w(w1, xp, hidden), b1
    w2p, b2p = w2, b2
    # fused gaussian head: columns [0:zp) -> mu (first z_dim real), [zp:2zp) -> logvar
    wg = jnp.zeros((hidden, 2 * zp), jnp.float32)
    wg = wg.at[:, :z_dim].set(wmu).at[:, zp:zp + z_dim].set(wlv)
    bg = jnp.zeros((1, 2 * zp), jnp.float32)
    bg = bg.at[:, :z_dim].set(bmu).at[:, zp:zp + z_dim].set(blv)
    wd1p, bd1p = pad_w(wd1, zp, hidden), bd1
    wd2p, bd2p = wd2, bd2
    wop, bop = pad_w(wo, hidden, xp), pad_b(bo, xp)

    cast = lambda w: w.astype(compute_dtype)
    return (cast(w1p), b1p, cast(w2p), b2p, cast(wg), bg,
            cast(wd1p), bd1p, cast(wd2p), bd2p, cast(wop), bop)


# ---------------------------------------------------------------------------
# Wrapper
# ---------------------------------------------------------------------------
@functools.partial(jax.jit, static_argnames=("block_batch", "compute_dtype"))
def vae1_forward(x, eps, params, *, block_batch=256,
                 compute_dtype=jnp.bfloat16):
    B, x_dim = x.shape
    z_dim = eps.shape[1]
    xp = _round_up(x_dim, 128)
    zp = _round_up(z_dim, 128)

    kparams = prepare_params(params, x_dim, z_dim, HIDDEN, compute_dtype)

    # Batch tile: MXU-aligned, capped at block_batch; pad B up to a multiple.
    tb = min(block_batch, _round_up(B, 8))
    b_pad = _round_up(B, tb)
    nb = b_pad // tb

    x_pad = jnp.zeros((b_pad, xp), jnp.float32).at[:B, :x_dim].set(x)
    eps_pad = jnp.zeros((b_pad, zp), jnp.float32).at[:B, :z_dim].set(eps)

    tile_spec = lambda feat: pl.BlockSpec((tb, feat), lambda i: (i, 0))
    const_spec = lambda p: pl.BlockSpec(p.shape, lambda i: (0, 0))  # VMEM-resident

    in_specs = [tile_spec(xp), tile_spec(zp)] + [const_spec(p) for p in kparams]
    out_specs = (tile_spec(zp), tile_spec(zp), tile_spec(zp), tile_spec(xp))
    out_shape = (
        jax.ShapeDtypeStruct((b_pad, zp), jnp.float32),   # mu (padded)
        jax.ShapeDtypeStruct((b_pad, zp), jnp.float32),   # var (padded)
        jax.ShapeDtypeStruct((b_pad, zp), jnp.float32),   # z (padded)
        jax.ShapeDtypeStruct((b_pad, xp), jnp.float32),   # sigmoid (padded)
    )

    mu, var, z, sig = pl.pallas_call(
        vae_kernel,
        out_shape=out_shape,
        grid=(nb,),
        in_specs=in_specs,
        out_specs=out_specs,
        compiler_params=pltpu.CompilerParams(
            dimension_semantics=("parallel",),   # v7x: shard batch over 2 TCs
            vmem_limit_bytes=64 << 20,           # explicit budget (v7x-safe)
        ),
    )(x_pad, eps_pad, *kparams)

    return {
        'muZ_x': mu[:B, :z_dim],
        'varZ_x': var[:B, :z_dim],
        'z_x': z[:B, :z_dim],
        'sigmoid_x': sig[:B, :x_dim],
    }


# ---------------------------------------------------------------------------
# Pure-JAX reference (for a loose correctness check)
# ---------------------------------------------------------------------------
def vae1_ref(x, eps, params):
    (w1, b1, w2, b2, wmu, bmu, wlv, blv,
     wd1, bd1, wd2, bd2, wo, bo) = params
    h = jnp.maximum(x @ w1 + b1, 0.0)
    h = jnp.maximum(h @ w2 + b2, 0.0)
    mu = h @ wmu + bmu
    logvar = h @ wlv + blv
    var = jnp.exp(logvar)
    z = mu + jnp.sqrt(var) * eps
    d = jnp.maximum(z @ wd1 + bd1, 0.0)
    d = d @ wd2 + bd2
    sig = jax.nn.sigmoid(d @ wo + bo)
    return {'muZ_x': mu, 'varZ_x': var, 'z_x': z, 'sigmoid_x': sig}


if __name__ == "__main__":
    # Small shapes consistent with a flattened 2-D input.
    B, X_DIM, Z_DIM = 8, 64, 16

    key = jax.random.PRNGKey(0)
    k_x, k_eps, k_params = jax.random.split(key, 3)

    x = jax.random.uniform(k_x, (B, X_DIM), jnp.float32)      # "flattened" data
    eps = jax.random.normal(k_eps, (B, Z_DIM), jnp.float32)   # reparam noise
    params = init_params(k_params, X_DIM, Z_DIM)

    out = vae1_forward(x, eps, params)
    jax.block_until_ready(out)

    # Shape sanity checks.
    assert out['muZ_x'].shape == (B, Z_DIM)
    assert out['varZ_x'].shape == (B, Z_DIM)
    assert out['z_x'].shape == (B, Z_DIM)
    assert out['sigmoid_x'].shape == (B, X_DIM)

    # Loose numerical check vs pure-JAX f32 reference (bf16 matmuls + approx
    # reciprocal in the kernel -> generous tolerance).
    ref = vae1_ref(x, eps, params)
    for k in ('muZ_x', 'varZ_x', 'z_x', 'sigmoid_x'):
        np.testing.assert_allclose(np.asarray(out[k]), np.asarray(ref[k]),
                                   atol=0.1, rtol=0.1)

    print("KERNEL_OK")
</pallas_src>

<mosaic_0001>
module attributes {stable_mosaic.version = 11 : i64} {
  func.func @vae_kernel(%arg0: i32, %arg1: memref<8x128xf32, #tpu.memory_space<vmem>>, %arg2: memref<8x128xf32, #tpu.memory_space<vmem>>, %arg3: memref<128x512xbf16, #tpu.memory_space<vmem>>, %arg4: memref<1x512xf32, #tpu.memory_space<vmem>>, %arg5: memref<512x512xbf16, #tpu.memory_space<vmem>>, %arg6: memref<1x512xf32, #tpu.memory_space<vmem>>, %arg7: memref<512x256xbf16, #tpu.memory_space<vmem>>, %arg8: memref<1x256xf32, #tpu.memory_space<vmem>>, %arg9: memref<128x512xbf16, #tpu.memory_space<vmem>>, %arg10: memref<1x512xf32, #tpu.memory_space<vmem>>, %arg11: memref<512x512xbf16, #tpu.memory_space<vmem>>, %arg12: memref<1x512xf32, #tpu.memory_space<vmem>>, %arg13: memref<512x128xbf16, #tpu.memory_space<vmem>>, %arg14: memref<1x128xf32, #tpu.memory_space<vmem>>, %arg15: memref<8x128xf32, #tpu.memory_space<vmem>>, %arg16: memref<8x128xf32, #tpu.memory_space<vmem>>, %arg17: memref<8x128xf32, #tpu.memory_space<vmem>>, %arg18: memref<8x128xf32, #tpu.memory_space<vmem>>) attributes {dimension_semantics = [#tpu.dimension_semantics<parallel>], iteration_bounds = array<i64: 1>, scalar_prefetch = 0 : i64, scratch_operands = 0 : i64, tpu.core_type = #tpu.core_type<tc>, window_params = [{transform_indices = @transform_0, window_bounds = array<i64: 8, 128>}, {transform_indices = @transform_1, window_bounds = array<i64: 8, 128>}, {pipeline_mode = #tpu.pipeline_mode<synchronous>, transform_indices = @transform_2, window_bounds = array<i64: 128, 512>}, {pipeline_mode = #tpu.pipeline_mode<synchronous>, transform_indices = @transform_3, window_bounds = array<i64: 1, 512>}, {pipeline_mode = #tpu.pipeline_mode<synchronous>, transform_indices = @transform_4, window_bounds = array<i64: 512, 512>}, {pipeline_mode = #tpu.pipeline_mode<synchronous>, transform_indices = @transform_5, window_bounds = array<i64: 1, 512>}, {pipeline_mode = #tpu.pipeline_mode<synchronous>, transform_indices = @transform_6, window_bounds = array<i64: 512, 256>}, {pipeline_mode = #tpu.pipeline_mode<synchronous>, transform_indices = @transform_7, window_bounds = array<i64: 1, 256>}, {pipeline_mode = #tpu.pipeline_mode<synchronous>, transform_indices = @transform_8, window_bounds = array<i64: 128, 512>}, {pipeline_mode = #tpu.pipeline_mode<synchronous>, transform_indices = @transform_9, window_bounds = array<i64: 1, 512>}, {pipeline_mode = #tpu.pipeline_mode<synchronous>, transform_indices = @transform_10, window_bounds = array<i64: 512, 512>}, {pipeline_mode = #tpu.pipeline_mode<synchronous>, transform_indices = @transform_11, window_bounds = array<i64: 1, 512>}, {pipeline_mode = #tpu.pipeline_mode<synchronous>, transform_indices = @transform_12, window_bounds = array<i64: 512, 128>}, {pipeline_mode = #tpu.pipeline_mode<synchronous>, transform_indices = @transform_13, window_bounds = array<i64: 1, 128>}, {transform_indices = @transform_14, window_bounds = array<i64: 8, 128>}, {transform_indices = @transform_15, window_bounds = array<i64: 8, 128>}, {transform_indices = @transform_16, window_bounds = array<i64: 8, 128>}, {transform_indices = @transform_17, window_bounds = array<i64: 8, 128>}]} {
    %c0 = arith.constant 0 : index
    %c0_0 = arith.constant 0 : index
    %0 = vector.load %arg1[%c0, %c0_0] : memref<8x128xf32, #tpu.memory_space<vmem>>, vector<8x128xf32>
    %1 = arith.truncf %0 : vector<8x128xf32> to vector<8x128xbf16>
    %c0_1 = arith.constant 0 : index
    %c0_2 = arith.constant 0 : index
    %2 = vector.load %arg3[%c0_1, %c0_2] : memref<128x512xbf16, #tpu.memory_space<vmem>>, vector<128x512xbf16>
    %cst = arith.constant dense<0.000000e+00> : vector<8x512xf32>
    %3 = tpu.matmul %1, %2, %cst {dimension_numbers = #tpu.dot_dimension_numbers<[1], [0], [0], [1], [0, 0, 1, 1], [], []>} : vector<8x128xbf16>, vector<128x512xbf16>, vector<8x512xf32> -> vector<8x512xf32>
    %c0_3 = arith.constant 0 : index
    %c0_4 = arith.constant 0 : index
    %4 = vector.load %arg4[%c0_3, %c0_4] : memref<1x512xf32, #tpu.memory_space<vmem>>, vector<1x512xf32>
    %5 = vector.broadcast %4 : vector<1x512xf32> to vector<8x512xf32>
    %6 = arith.addf %3, %5 : vector<8x512xf32>
    %cst_5 = arith.constant 0.000000e+00 : f32
    %7 = vector.broadcast %cst_5 : f32 to vector<8x512xf32>
    %8 = arith.maximumf %6, %7 : vector<8x512xf32>
    %9 = arith.truncf %8 : vector<8x512xf32> to vector<8x512xbf16>
    %c0_6 = arith.constant 0 : index
    %c0_7 = arith.constant 0 : index
    %10 = vector.load %arg5[%c0_6, %c0_7] : memref<512x512xbf16, #tpu.memory_space<vmem>>, vector<512x512xbf16>
    %cst_8 = arith.constant dense<0.000000e+00> : vector<8x512xf32>
    %11 = tpu.matmul %9, %10, %cst_8 {dimension_numbers = #tpu.dot_dimension_numbers<[1], [0], [0], [1], [0, 0, 1, 1], [], []>} : vector<8x512xbf16>, vector<512x512xbf16>, vector<8x512xf32> -> vector<8x512xf32>
    %c0_9 = arith.constant 0 : index
    %c0_10 = arith.constant 0 : index
    %12 = vector.load %arg6[%c0_9, %c0_10] : memref<1x512xf32, #tpu.memory_space<vmem>>, vector<1x512xf32>
    %13 = vector.broadcast %12 : vector<1x512xf32> to vector<8x512xf32>
    %14 = arith.addf %11, %13 : vector<8x512xf32>
    %cst_11 = arith.constant 0.000000e+00 : f32
    %15 = vector.broadcast %cst_11 : f32 to vector<8x512xf32>
    %16 = arith.maximumf %14, %15 : vector<8x512xf32>
    %17 = arith.truncf %16 : vector<8x512xf32> to vector<8x512xbf16>
    %c0_12 = arith.constant 0 : index
    %c0_13 = arith.constant 0 : index
    %18 = vector.load %arg7[%c0_12, %c0_13] : memref<512x256xbf16, #tpu.memory_space<vmem>>, vector<512x256xbf16>
    %cst_14 = arith.constant dense<0.000000e+00> : vector<8x256xf32>
    %19 = tpu.matmul %17, %18, %cst_14 {dimension_numbers = #tpu.dot_dimension_numbers<[1], [0], [0], [1], [0, 0, 1, 1], [], []>} : vector<8x512xbf16>, vector<512x256xbf16>, vector<8x256xf32> -> vector<8x256xf32>
    %c0_15 = arith.constant 0 : index
    %c0_16 = arith.constant 0 : index
    %20 = vector.load %arg8[%c0_15, %c0_16] : memref<1x256xf32, #tpu.memory_space<vmem>>, vector<1x256xf32>
    %21 = vector.broadcast %20 : vector<1x256xf32> to vector<8x256xf32>
    %22 = arith.addf %19, %21 : vector<8x256xf32>
    %23 = vector.extract_strided_slice %22 {offsets = [0, 0], sizes = [8, 128], strides = [1, 1]} : vector<8x256xf32> to vector<8x128xf32>
    %24 = vector.extract_strided_slice %22 {offsets = [0, 128], sizes = [8, 128], strides = [1, 1]} : vector<8x256xf32> to vector<8x128xf32>
    %cst_17 = arith.constant 5.000000e-01 : f32
    %25 = vector.broadcast %cst_17 : f32 to vector<8x128xf32>
    %26 = arith.mulf %25, %24 : vector<8x128xf32>
    %27 = math.exp %26 : vector<8x128xf32>
    %28 = arith.mulf %27, %27 : vector<8x128xf32>
    %c0_18 = arith.constant 0 : index
    %c0_19 = arith.constant 0 : index
    %29 = vector.load %arg2[%c0_18, %c0_19] : memref<8x128xf32, #tpu.memory_space<vmem>>, vector<8x128xf32>
    %30 = arith.mulf %27, %29 : vector<8x128xf32>
    %31 = arith.addf %23, %30 : vector<8x128xf32>
    %32 = arith.truncf %31 : vector<8x128xf32> to vector<8x128xbf16>
    %c0_20 = arith.constant 0 : index
    %c0_21 = arith.constant 0 : index
    %33 = vector.load %arg9[%c0_20, %c0_21] : memref<128x512xbf16, #tpu.memory_space<vmem>>, vector<128x512xbf16>
    %cst_22 = arith.constant dense<0.000000e+00> : vector<8x512xf32>
    %34 = tpu.matmul %32, %33, %cst_22 {dimension_numbers = #tpu.dot_dimension_numbers<[1], [0], [0], [1], [0, 0, 1, 1], [], []>} : vector<8x128xbf16>, vector<128x512xbf16>, vector<8x512xf32> -> vector<8x512xf32>
    %c0_23 = arith.constant 0 : index
    %c0_24 = arith.constant 0 : index
    %35 = vector.load %arg10[%c0_23, %c0_24] : memref<1x512xf32, #tpu.memory_space<vmem>>, vector<1x512xf32>
    %36 = vector.broadcast %35 : vector<1x512xf32> to vector<8x512xf32>
    %37 = arith.addf %34, %36 : vector<8x512xf32>
    %cst_25 = arith.constant 0.000000e+00 : f32
    %38 = vector.broadcast %cst_25 : f32 to vector<8x512xf32>
    %39 = arith.maximumf %37, %38 : vector<8x512xf32>
    %40 = arith.truncf %39 : vector<8x512xf32> to vector<8x512xbf16>
    %c0_26 = arith.constant 0 : index
    %c0_27 = arith.constant 0 : index
    %41 = vector.load %arg11[%c0_26, %c0_27] : memref<512x512xbf16, #tpu.memory_space<vmem>>, vector<512x512xbf16>
    %cst_28 = arith.constant dense<0.000000e+00> : vector<8x512xf32>
    %42 = tpu.matmul %40, %41, %cst_28 {dimension_numbers = #tpu.dot_dimension_numbers<[1], [0], [0], [1], [0, 0, 1, 1], [], []>} : vector<8x512xbf16>, vector<512x512xbf16>, vector<8x512xf32> -> vector<8x512xf32>
    %c0_29 = arith.constant 0 : index
    %c0_30 = arith.constant 0 : index
    %43 = vector.load %arg12[%c0_29, %c0_30] : memref<1x512xf32, #tpu.memory_space<vmem>>, vector<1x512xf32>
    %44 = vector.broadcast %43 : vector<1x512xf32> to vector<8x512xf32>
    %45 = arith.addf %42, %44 : vector<8x512xf32>
    %46 = arith.truncf %45 : vector<8x512xf32> to vector<8x512xbf16>
    %c0_31 = arith.constant 0 : index
    %c0_32 = arith.constant 0 : index
    %47 = vector.load %arg13[%c0_31, %c0_32] : memref<512x128xbf16, #tpu.memory_space<vmem>>, vector<512x128xbf16>
    %cst_33 = arith.constant dense<0.000000e+00> : vector<8x128xf32>
    %48 = tpu.matmul %46, %47, %cst_33 {dimension_numbers = #tpu.dot_dimension_numbers<[1], [0], [0], [1], [0, 0, 1, 1], [], []>} : vector<8x512xbf16>, vector<512x128xbf16>, vector<8x128xf32> -> vector<8x128xf32>
    %c0_34 = arith.constant 0 : index
    %c0_35 = arith.constant 0 : index
    %49 = vector.load %arg14[%c0_34, %c0_35] : memref<1x128xf32, #tpu.memory_space<vmem>>, vector<1x128xf32>
    %50 = vector.broadcast %49 : vector<1x128xf32> to vector<8x128xf32>
    %51 = arith.addf %48, %50 : vector<8x128xf32>
    %cst_36 = arith.constant 0.000000e+00 : f32
    %52 = vector.broadcast %cst_36 : f32 to vector<8x128xf32>
    %53 = arith.subf %52, %51 : vector<8x128xf32>
    %54 = math.exp %53 : vector<8x128xf32>
    %cst_37 = arith.constant 1.000000e+00 : f32
    %55 = vector.broadcast %cst_37 : f32 to vector<8x128xf32>
    %56 = arith.addf %55, %54 : vector<8x128xf32>
    %57 = tpu.reciprocal %56 {approx = true} : vector<8x128xf32> -> vector<8x128xf32>
    %c0_38 = arith.constant 0 : index
    %c0_39 = arith.constant 0 : index
    %58 = vector.load %arg15[%c0_38, %c0_39] : memref<8x128xf32, #tpu.memory_space<vmem>>, vector<8x128xf32>
    tpu.vector_store %arg15[%c0_38, %c0_39], %23 {strides = array<i32>} : memref<8x128xf32, #tpu.memory_space<vmem>>, vector<8x128xf32>,
    %c0_40 = arith.constant 0 : index
    %c0_41 = arith.constant 0 : index
    %59 = vector.load %arg16[%c0_40, %c0_41] : memref<8x128xf32, #tpu.memory_space<vmem>>, vector<8x128xf32>
    tpu.vector_store %arg16[%c0_40, %c0_41], %28 {strides = array<i32>} : memref<8x128xf32, #tpu.memory_space<vmem>>, vector<8x128xf32>,
    %c0_42 = arith.constant 0 : index
    %c0_43 = arith.constant 0 : index
    %60 = vector.load %arg17[%c0_42, %c0_43] : memref<8x128xf32, #tpu.memory_space<vmem>>, vector<8x128xf32>
    tpu.vector_store %arg17[%c0_42, %c0_43], %31 {strides = array<i32>} : memref<8x128xf32, #tpu.memory_space<vmem>>, vector<8x128xf32>,
    %c0_44 = arith.constant 0 : index
    %c0_45 = arith.constant 0 : index
    %61 = vector.load %arg18[%c0_44, %c0_45] : memref<8x128xf32, #tpu.memory_space<vmem>>, vector<8x128xf32>
    tpu.vector_store %arg18[%c0_44, %c0_45], %57 {strides = array<i32>} : memref<8x128xf32, #tpu.memory_space<vmem>>, vector<8x128xf32>,
    return
  }
  func.func @transform_0(%arg0: i32) -> (i32, i32) {
    %c0_i32 = arith.constant 0 : i32
    %c0_i32_0 = arith.constant 0 : i32
    return %arg0, %c0_i32 : i32, i32
  }
  func.func @transform_1(%arg0: i32) -> (i32, i32) {
    %c0_i32 = arith.constant 0 : i32
    %c0_i32_0 = arith.constant 0 : i32
    return %arg0, %c0_i32 : i32, i32
  }
  func.func @transform_2(%arg0: i32) -> (i32, i32) {
    %c0_i32 = arith.constant 0 : i32
    %c0_i32_0 = arith.constant 0 : i32
    %c0_i32_1 = arith.constant 0 : i32
    return %c0_i32, %c0_i32_0 : i32, i32
  }
  func.func @transform_3(%arg0: i32) -> (i32, i32) {
    %c0_i32 = arith.constant 0 : i32
    %c0_i32_0 = arith.constant 0 : i32
    %c0_i32_1 = arith.constant 0 : i32
    return %c0_i32, %c0_i32_0 : i32, i32
  }
  func.func @transform_4(%arg0: i32) -> (i32, i32) {
    %c0_i32 = arith.constant 0 : i32
    %c0_i32_0 = arith.constant 0 : i32
    %c0_i32_1 = arith.constant 0 : i32
    return %c0_i32, %c0_i32_0 : i32, i32
  }
  func.func @transform_5(%arg0: i32) -> (i32, i32) {
    %c0_i32 = arith.constant 0 : i32
    %c0_i32_0 = arith.constant 0 : i32
    %c0_i32_1 = arith.constant 0 : i32
    return %c0_i32, %c0_i32_0 : i32, i32
  }
  func.func @transform_6(%arg0: i32) -> (i32, i32) {
    %c0_i32 = arith.constant 0 : i32
    %c0_i32_0 = arith.constant 0 : i32
    %c0_i32_1 = arith.constant 0 : i32
    return %c0_i32, %c0_i32_0 : i32, i32
  }
  func.func @transform_7(%arg0: i32) -> (i32, i32) {
    %c0_i32 = arith.constant 0 : i32
    %c0_i32_0 = arith.constant 0 : i32
    %c0_i32_1 = arith.constant 0 : i32
    return %c0_i32, %c0_i32_0 : i32, i32
  }
  func.func @transform_8(%arg0: i32) -> (i32, i32) {
    %c0_i32 = arith.constant 0 : i32
    %c0_i32_0 = arith.constant 0 : i32
    %c0_i32_1 = arith.constant 0 : i32
    return %c0_i32, %c0_i32_0 : i32, i32
  }
  func.func @transform_9(%arg0: i32) -> (i32, i32) {
    %c0_i32 = arith.constant 0 : i32
    %c0_i32_0 = arith.constant 0 : i32
    %c0_i32_1 = arith.constant 0 : i32
    return %c0_i32, %c0_i32_0 : i32, i32
  }
  func.func @transform_10(%arg0: i32) -> (i32, i32) {
    %c0_i32 = arith.constant 0 : i32
    %c0_i32_0 = arith.constant 0 : i32
    %c0_i32_1 = arith.constant 0 : i32
    return %c0_i32, %c0_i32_0 : i32, i32
  }
  func.func @transform_11(%arg0: i32) -> (i32, i32) {
    %c0_i32 = arith.constant 0 : i32
    %c0_i32_0 = arith.constant 0 : i32
    %c0_i32_1 = arith.constant 0 : i32
    return %c0_i32, %c0_i32_0 : i32, i32
  }
  func.func @transform_12(%arg0: i32) -> (i32, i32) {
    %c0_i32 = arith.constant 0 : i32
    %c0_i32_0 = arith.constant 0 : i32
    %c0_i32_1 = arith.constant 0 : i32
    return %c0_i32, %c0_i32_0 : i32, i32
  }
  func.func @transform_13(%arg0: i32) -> (i32, i32) {
    %c0_i32 = arith.constant 0 : i32
    %c0_i32_0 = arith.constant 0 : i32
    %c0_i32_1 = arith.constant 0 : i32
    return %c0_i32, %c0_i32_0 : i32, i32
  }
  func.func @transform_14(%arg0: i32) -> (i32, i32) {
    %c0_i32 = arith.constant 0 : i32
    %c0_i32_0 = arith.constant 0 : i32
    return %arg0, %c0_i32 : i32, i32
  }
  func.func @transform_15(%arg0: i32) -> (i32, i32) {
    %c0_i32 = arith.constant 0 : i32
    %c0_i32_0 = arith.constant 0 : i32
    return %arg0, %c0_i32 : i32, i32
  }
  func.func @transform_16(%arg0: i32) -> (i32, i32) {
    %c0_i32 = arith.constant 0 : i32
    %c0_i32_0 = arith.constant 0 : i32
    return %arg0, %c0_i32 : i32, i32
  }
  func.func @transform_17(%arg0: i32) -> (i32, i32) {
    %c0_i32 = arith.constant 0 : i32
    %c0_i32_0 = arith.constant 0 : i32
    return %arg0, %c0_i32 : i32, i32
  }
}

</mosaic_0001>

<llo_original>
// kernel: vae1_forward.1
$region0: #{vae1_forward.1}
  #allocation0 [shape = 'u32[]', space=smem, size = 0x4, offset = 0x4, fixed_abs, tag = 'smem constant byte address 0x4 - core index']
  #allocation1 [shape = 'u32[72,128]{1,0:T(1,128)}', space=vmem, size = 0x9000, scoped, tag = 'internal scratch']
  %s0 = inlined_call_operand.vmem [shape: f32[8,128], index: 0, kind: input, shape index: {}]
  %s1 = inlined_call_operand.vmem [shape: f32[8,128], index: 1, kind: input, shape index: {}]
  %s2 = inlined_call_operand.vmem [shape: bf16[128,512], index: 2, kind: input, shape index: {}]
  %s3 = inlined_call_operand.vmem [shape: f32[1,512], index: 3, kind: input, shape index: {}]
  %s4 = inlined_call_operand.vmem [shape: bf16[512,512], index: 4, kind: input, shape index: {}]
  %s5 = inlined_call_operand.vmem [shape: f32[1,512], index: 5, kind: input, shape index: {}]
  %s6 = inlined_call_operand.vmem [shape: bf16[512,256], index: 6, kind: input, shape index: {}]
  %s7 = inlined_call_operand.vmem [shape: f32[1,256], index: 7, kind: input, shape index: {}]
  %s8 = inlined_call_operand.vmem [shape: bf16[128,512], index: 8, kind: input, shape index: {}]
  %s9 = inlined_call_operand.vmem [shape: f32[1,512], index: 9, kind: input, shape index: {}]
  %s10 = inlined_call_operand.vmem [shape: bf16[512,512], index: 10, kind: input, shape index: {}]
  %s11 = inlined_call_operand.vmem [shape: f32[1,512], index: 11, kind: input, shape index: {}]
  %s12 = inlined_call_operand.vmem [shape: bf16[512,128], index: 12, kind: input, shape index: {}]
  %s13 = inlined_call_operand.vmem [shape: f32[1,128], index: 13, kind: input, shape index: {}]
  %s14 = inlined_call_operand.hbm [shape: f32[8,128], index: 14, kind: output, shape index: {0}]
  %s15 = inlined_call_operand.hbm [shape: f32[8,128], index: 15, kind: output, shape index: {1}]
  %s16 = inlined_call_operand.hbm [shape: f32[8,128], index: 16, kind: output, shape index: {2}]
  %s17 = inlined_call_operand.hbm [shape: f32[8,128], index: 17, kind: output, shape index: {3}]
  %18 = xla_tuple %s14, %s15, %s16, %s17
  %s19 = sld [smem:[#allocation0]]
  $region90: #{vae1_forward.1} parent=0
    _
  %s21 = ssub.s32 1, %s19
  %s22 = scalar_select 0, %s21, %s19
  $region1: #{vae1_forward.1} parent=0
    #allocation2 [shape = 'u8[4096]{0}', space=vmem, size = 0x1000, scoped, tag = 'output window, operand 0, single buffered']
    #allocation3 [shape = 's32[1]{0}', space=sflag, size = 0x4, scoped, tag = 'scoped memory for vae1_forward.1']
    #allocation4 [shape = 'u8[4096]{0}', space=vmem, size = 0x1000, scoped, tag = 'output window, operand 1, single buffered']
    #allocation5 [shape = 's32[1]{0}', space=sflag, size = 0x4, scoped, tag = 'scoped memory for vae1_forward.1']
    #allocation6 [shape = 'u8[4096]{0}', space=vmem, size = 0x1000, scoped, tag = 'output window, operand 2, single buffered']
    #allocation7 [shape = 'u8[4096]{0}', space=vmem, size = 0x1000, scoped, tag = 'output window, operand 3, single buffered']
    #allocation8 [shape = 's32[1]{0}', space=sflag, size = 0x4, scoped, tag = 'scoped memory for vae1_forward.1']
    %23 = vsyncpa [#allocation3], 0
    %24 = vsyncpa [#allocation5], 0
    %25 = vsyncpa [#allocation8], 0
    // Predicated region
    $region2: #{vae1_forward.1} parent=1 // pred_check
      _
    $region3: #{vae1_forward.1} parent=1 // pred_check_branch
      %27 = sbr.rel (0) target = $region5
    $region4: #{vae1_forward.1} parent=1 // pred_region
      _
    $region5: #{vae1_forward.1} parent=1 // pred_fallthru
      _
    // Predicated region
    $region6: #{vae1_forward.1} parent=1 // pred_check
      _
    $region7: #{vae1_forward.1} parent=1 // pred_check_branch
      %29 = sbr.rel (0) target = $region9
    $region8: #{vae1_forward.1} parent=1 // pred_region
      _
    $region9: #{vae1_forward.1} parent=1 // pred_fallthru
      _
    // Predicated region
    $region10: #{vae1_forward.1} parent=1 // pred_check
      _
    $region11: #{vae1_forward.1} parent=1 // pred_check_branch
      %31 = sbr.rel (0) target = $region13
    $region12: #{vae1_forward.1} parent=1 // pred_region
      _
    $region13: #{vae1_forward.1} parent=1 // pred_fallthru
      _
    // Predicated region
    $region14: #{vae1_forward.1} parent=1 // pred_check
      _
    $region15: #{vae1_forward.1} parent=1 // pred_check_branch
      %33 = sbr.rel (0) target = $region17
    $region16: #{vae1_forward.1} parent=1 // pred_region
      _
    $region17: #{vae1_forward.1} parent=1 // pred_fallthru
      _
    // Predicated region
    $region18: #{vae1_forward.1} parent=1 // pred_check
      _
    $region19: #{vae1_forward.1} parent=1 // pred_check_branch
      %35 = sbr.rel (0) target = $region21
    $region20: #{vae1_forward.1} parent=1 // pred_region
      _
    $region21: #{vae1_forward.1} parent=1 // pred_fallthru
      _
    // Predicated region
    $region22: #{vae1_forward.1} parent=1 // pred_check
      _
    $region23: #{vae1_forward.1} parent=1 // pred_check_branch
      %37 = sbr.rel (0) target = $region25
    $region24: #{vae1_forward.1} parent=1 // pred_region
      _
    $region25: #{vae1_forward.1} parent=1 // pred_fallthru
      _
    // Predicated region
    $region26: #{vae1_forward.1} parent=1 // pred_check
      _
    $region27: #{vae1_forward.1} parent=1 // pred_check_branch
      %39 = sbr.rel (0) target = $region29
    $region28: #{vae1_forward.1} parent=1 // pred_region
      _
    $region29: #{vae1_forward.1} parent=1 // pred_fallthru
      _
    // Predicated region
    $region30: #{vae1_forward.1} parent=1 // pred_check
      _
    $region31: #{vae1_forward.1} parent=1 // pred_check_branch
      %41 = sbr.rel (0) target = $region33
    $region32: #{vae1_forward.1} parent=1 // pred_region
      _
    $region33: #{vae1_forward.1} parent=1 // pred_fallthru
      _
    // Predicated region
    $region34: #{vae1_forward.1} parent=1 // pred_check
      _
    $region35: #{vae1_forward.1} parent=1 // pred_check_branch
      %43 = sbr.rel (0) target = $region37
    $region36: #{vae1_forward.1} parent=1 // pred_region
      _
    $region37: #{vae1_forward.1} parent=1 // pred_fallthru
      _
    // Predicated region
    $region38: #{vae1_forward.1} parent=1 // pred_check
      _
    $region39: #{vae1_forward.1} parent=1 // pred_check_branch
      %45 = sbr.rel (0) target = $region41
    $region40: #{vae1_forward.1} parent=1 // pred_region
      _
    $region41: #{vae1_forward.1} parent=1 // pred_fallthru
      _
    // Predicated region
    $region42: #{vae1_forward.1} parent=1 // pred_check
      _
    $region43: #{vae1_forward.1} parent=1 // pred_check_branch
      %47 = sbr.rel (0) target = $region45
    $region44: #{vae1_forward.1} parent=1 // pred_region
      _
    $region45: #{vae1_forward.1} parent=1 // pred_fallthru
      _
    // Predicated region
    $region46: #{vae1_forward.1} parent=1 // pred_check
      _
    $region47: #{vae1_forward.1} parent=1 // pred_check_branch
      %49 = sbr.rel (0) target = $region49
    $region48: #{vae1_forward.1} parent=1 // pred_region
      _
    $region49: #{vae1_forward.1} parent=1 // pred_fallthru
      _
    // Predicated region
    $region50: #{vae1_forward.1} parent=1 // pred_check
      _
    $region51: #{vae1_forward.1} parent=1 // pred_check_branch
      %51 = sbr.rel (0) target = $region53
    $region52: #{vae1_forward.1} parent=1 // pred_region
      _
    $region53: #{vae1_forward.1} parent=1 // pred_fallthru
      _
    // Predicated region
    $region54: #{vae1_forward.1} parent=1 // pred_check
      _
    $region55: #{vae1_forward.1} parent=1 // pred_check_branch
      %53 = sbr.rel (0) target = $region57
    $region56: #{vae1_forward.1} parent=1 // pred_region
      _
    $region57: #{vae1_forward.1} parent=1 // pred_fallthru
      _
    %v54 = vld [vmem:[%s0] sm:$0xff]
    %v55 = vpack.c.bf16 %v54, %v54
    %v56 = vld [vmem:[%s2] sm:$0xff]
    %v57 = vld [vmem:[%s2 + $0x8] sm:$0xff]
    %v58 = vld [vmem:[%s2 + $0x10] sm:$0xff]
    %v59 = vld [vmem:[%s2 + $0x18] sm:$0xff]
    %v60 = vld [vmem:[%s2 + $0x20] sm:$0xff]
    %v61 = vld [vmem:[%s2 + $0x28] sm:$0xff]
    %v62 = vld [vmem:[%s2 + $0x30] sm:$0xff]
    %v63 = vld [vmem:[%s2 + $0x38] sm:$0xff]
    %v64 = vld [vmem:[%s2 + $0x40] sm:$0xff]
    %v65 = vld [vmem:[%s2 + $0x48] sm:$0xff]
    %v66 = vld [vmem:[%s2 + $0x50] sm:$0xff]
    %v67 = vld [vmem:[%s2 + $0x58] sm:$0xff]
    %v68 = vld [vmem:[%s2 + $0x60] sm:$0xff]
    %v69 = vld [vmem:[%s2 + $0x68] sm:$0xff]
    %v70 = vld [vmem:[%s2 + $0x70] sm:$0xff]
    %v71 = vld [vmem:[%s2 + $0x78] sm:$0xff]
    %v72 = vld [vmem:[%s2 + $0x80] sm:$0xff]
    %v73 = vld [vmem:[%s2 + $0x88] sm:$0xff]
    %v74 = vld [vmem:[%s2 + $0x90] sm:$0xff]
    %v75 = vld [vmem:[%s2 + $0x98] sm:$0xff]
    %v76 = vld [vmem:[%s2 + $0xa0] sm:$0xff]
    %v77 = vld [vmem:[%s2 + $0xa8] sm:$0xff]
    %v78 = vld [vmem:[%s2 + $0xb0] sm:$0xff]
    %v79 = vld [vmem:[%s2 + $0xb8] sm:$0xff]
    %v80 = vld [vmem:[%s2 + $0xc0] sm:$0xff]
    %v81 = vld [vmem:[%s2 + $0xc8] sm:$0xff]
    %v82 = vld [vmem:[%s2 + $0xd0] sm:$0xff]
    %v83 = vld [vmem:[%s2 + $0xd8] sm:$0xff]
    %v84 = vld [vmem:[%s2 + $0xe0] sm:$0xff]
    %v85 = vld [vmem:[%s2 + $0xe8] sm:$0xff]
    %v86 = vld [vmem:[%s2 + $0xf0] sm:$0xff]
    %v87 = vld [vmem:[%s2 + $0xf8] sm:$0xff]
    %v88 = vld [vmem:[%s3] sm:$0xf]
    %v90 = vperm.slane %v88, 0
    %v91 = vperm.slane %v88, 1
    %v92 = vperm.slane %v88, 2
    %v93 = vperm.slane %v88, 3
    %v130 = vunpack.c.l.b16 %v56
    %v131 = vunpack.c.h.b16 %v56
    %v132 = vunpack.c.l.b16 %v57
    %v133 = vunpack.c.h.b16 %v57
    %v134 = vunpack.c.l.b16 %v58
    %v135 = vunpack.c.h.b16 %v58
    %v136 = vunpack.c.l.b16 %v59
    %v137 = vunpack.c.h.b16 %v59
    %v138 = vunpack.c.l.b16 %v60
    %v139 = vunpack.c.h.b16 %v60
    %v140 = vunpack.c.l.b16 %v61
    %v141 = vunpack.c.h.b16 %v61
    %v142 = vunpack.c.l.b16 %v62
    %v143 = vunpack.c.h.b16 %v62
    %v144 = vunpack.c.l.b16 %v63
    %v145 = vunpack.c.h.b16 %v63
    %v146 = vunpack.c.l.b16 %v64
    %v147 = vunpack.c.h.b16 %v64
    %v148 = vunpack.c.l.b16 %v65
    %v149 = vunpack.c.h.b16 %v65
    %v150 = vunpack.c.l.b16 %v66
    %v151 = vunpack.c.h.b16 %v66
    %v152 = vunpack.c.l.b16 %v67
    %v153 = vunpack.c.h.b16 %v67
    %v154 = vunpack.c.l.b16 %v68
    %v155 = vunpack.c.h.b16 %v68
    %v156 = vunpack.c.l.b16 %v69
    %v157 = vunpack.c.h.b16 %v69
    %v158 = vunpack.c.l.b16 %v70
    %v159 = vunpack.c.h.b16 %v70
    %v160 = vunpack.c.l.b16 %v71
    %v161 = vunpack.c.h.b16 %v71
    %v162 = vunpack.c.l.b16 %v72
    %v163 = vunpack.c.h.b16 %v72
    %v164 = vunpack.c.l.b16 %v73
    %v165 = vunpack.c.h.b16 %v73
    %v166 = vunpack.c.l.b16 %v74
    %v167 = vunpack.c.h.b16 %v74
    %v168 = vunpack.c.l.b16 %v75
    %v169 = vunpack.c.h.b16 %v75
    %v170 = vunpack.c.l.b16 %v76
    %v171 = vunpack.c.h.b16 %v76
    %v172 = vunpack.c.l.b16 %v77
    %v173 = vunpack.c.h.b16 %v77
    %v174 = vunpack.c.l.b16 %v78
    %v175 = vunpack.c.h.b16 %v78
    %v176 = vunpack.c.l.b16 %v79
    %v177 = vunpack.c.h.b16 %v79
    %v178 = vunpack.c.l.b16 %v80
    %v179 = vunpack.c.h.b16 %v80
    %v180 = vunpack.c.l.b16 %v81
    %v181 = vunpack.c.h.b16 %v81
    %v182 = vunpack.c.l.b16 %v82
    %v183 = vunpack.c.h.b16 %v82
    %v184 = vunpack.c.l.b16 %v83
    %v185 = vunpack.c.h.b16 %v83
    %v186 = vunpack.c.l.b16 %v84
    %v187 = vunpack.c.h.b16 %v84
    %v188 = vunpack.c.l.b16 %v85
    %v189 = vunpack.c.h.b16 %v85
    %v190 = vunpack.c.l.b16 %v86
    %v191 = vunpack.c.h.b16 %v86
    %v192 = vunpack.c.l.b16 %v87
    %v193 = vunpack.c.h.b16 %v87
    %v194 = vpack.c.b16 %v134, %v130
    %v195 = vpack.c.b16 %v135, %v131
    %v196 = vpack.c.b16 %v136, %v132
    %v197 = vpack.c.b16 %v137, %v133
    %v198 = vpack.c.b16 %v142, %v138
    %v199 = vpack.c.b16 %v143, %v139
    %v200 = vpack.c.b16 %v144, %v140
    %v201 = vpack.c.b16 %v145, %v141
    %v202 = vpack.c.b16 %v150, %v146
    %v203 = vpack.c.b16 %v151, %v147
    %v204 = vpack.c.b16 %v152, %v148
    %v205 = vpack.c.b16 %v153, %v149
    %v206 = vpack.c.b16 %v158, %v154
    %v207 = vpack.c.b16 %v159, %v155
    %v208 = vpack.c.b16 %v160, %v156
    %v209 = vpack.c.b16 %v161, %v157
    %v210 = vpack.c.b16 %v166, %v162
    %v211 = vpack.c.b16 %v167, %v163
    %v212 = vpack.c.b16 %v168, %v164
    %v213 = vpack.c.b16 %v169, %v165
    %v214 = vpack.c.b16 %v174, %v170
    %v215 = vpack.c.b16 %v175, %v171
    %v216 = vpack.c.b16 %v176, %v172
    %v217 = vpack.c.b16 %v177, %v173
    %v218 = vpack.c.b16 %v182, %v178
    %v219 = vpack.c.b16 %v183, %v179
    %v220 = vpack.c.b16 %v184, %v180
    %v221 = vpack.c.b16 %v185, %v181
    %v222 = vpack.c.b16 %v190, %v186
    %v223 = vpack.c.b16 %v191, %v187
    %v224 = vpack.c.b16 %v192, %v188
    %v225 = vpack.c.b16 %v193, %v189
    %258 = vmatpush.bf16.msra.mxu0 %v222
    %259 = vmatpush.bf16.msra.mxu0 %v218
    %260 = vmatpush.bf16.msra.mxu0 %v214
    %261 = vmatpush.bf16.msra.mxu0 %v210
    %262 = vmatpush.bf16.msra.mxu0 %v206
    %263 = vmatpush.bf16.msra.mxu0 %v202
    %264 = vmatpush.bf16.msra.mxu0 %v198
    %265 = vmatpush.bf16.msra.mxu0 %v194
    %266 = vmatmul.bf16.gmra.mxu0 %v55
    %v267 = vpop.f32.mrf.mxu0
    %v268 = vadd.f32 %v90, %v267
    %v269 = vpop.f32.mrf.mxu0
    %270 = vdwg.mxu0
    %271 = vmatpush.bf16.msra.mxu0 %v223
    %272 = vmatpush.bf16.msra.mxu0 %v219
    %273 = vmatpush.bf16.msra.mxu0 %v215
    %274 = vmatpush.bf16.msra.mxu0 %v211
    %275 = vmatpush.bf16.msra.mxu0 %v207
    %276 = vmatpush.bf16.msra.mxu0 %v203
    %277 = vmatpush.bf16.msra.mxu0 %v199
    %278 = vmatpush.bf16.msra.mxu0 %v195
    %279 = vmatmul.bf16.gmra.mxu0 %v55
    %v280 = vpop.f32.mrf.mxu0
    %v281 = vadd.f32 %v91, %v280
    %v282 = vpop.f32.mrf.mxu0
    %283 = vdwg.mxu0
    %284 = vmatpush.bf16.msra.mxu0 %v224
    %285 = vmatpush.bf16.msra.mxu0 %v220
    %286 = vmatpush.bf16.msra.mxu0 %v216
    %287 = vmatpush.bf16.msra.mxu0 %v212
    %288 = vmatpush.bf16.msra.mxu0 %v208
    %289 = vmatpush.bf16.msra.mxu0 %v204
    %290 = vmatpush.bf16.msra.mxu0 %v200
    %291 = vmatpush.bf16.msra.mxu0 %v196
    %292 = vmatmul.bf16.gmra.mxu0 %v55
    %v293 = vpop.f32.mrf.mxu0
    %v294 = vadd.f32 %v92, %v293
    %v295 = vpop.f32.mrf.mxu0
    %296 = vdwg.mxu0
    %297 = vmatpush.bf16.msra.mxu0 %v225
    %298 = vmatpush.bf16.msra.mxu0 %v221
    %299 = vmatpush.bf16.msra.mxu0 %v217
    %300 = vmatpush.bf16.msra.mxu0 %v213
    %301 = vmatpush.bf16.msra.mxu0 %v209
    %302 = vmatpush.bf16.msra.mxu0 %v205
    %303 = vmatpush.bf16.msra.mxu0 %v201
    %304 = vmatpush.bf16.msra.mxu0 %v197
    %305 = vmatmul.bf16.gmra.mxu0 %v55
    %v306 = vpop.f32.mrf.mxu0
    %v307 = vadd.f32 %v93, %v306
    %v308 = vpop.f32.mrf.mxu0
    %309 = vdwg.mxu0
    %v310 = vmax.f32 %v268, 0.0
    %v311 = vmax.f32 %v281, 0.0
    %v312 = vmax.f32 %v294, 0.0
    %v313 = vmax.f32 %v307, 0.0
    %v314 = vpack.c.bf16 %v310, %v310
    %v315 = vpack.c.bf16 %v311, %v311
    %v316 = vpack.c.bf16 %v312, %v312
    %v317 = vpack.c.bf16 %v313, %v313
    %v318 = vld [vmem:[%s4] sm:$0xff]
    %v319 = vld [vmem:[%s4 + $0x8] sm:$0xff]
    %v320 = vld [vmem:[%s4 + $0x10] sm:$0xff]
    %v321 = vld [vmem:[%s4 + $0x18] sm:$0xff]
    %v322 = vld [vmem:[%s4 + $0x20] sm:$0xff]
    %v323 = vld [vmem:[%s4 + $0x28] sm:$0xff]
    %v324 = vld [vmem:[%s4 + $0x30] sm:$0xff]
    %v325 = vld [vmem:[%s4 + $0x38] sm:$0xff]
    %v326 = vld [vmem:[%s4 + $0x40] sm:$0xff]
    %v327 = vld [vmem:[%s4 + $0x48] sm:$0xff]
    %v328 = vld [vmem:[%s4 + $0x50] sm:$0xff]
    %v329 = vld [vmem:[%s4 + $0x58] sm:$0xff]
    %v330 = vld [vmem:[%s4 + $0x60] sm:$0xff]
    %v331 = vld [vmem:[%s4 + $0x68] sm:$0xff]
    %v332 = vld [vmem:[%s4 + $0x70] sm:$0xff]
    %v333 = vld [vmem:[%s4 + $0x78] sm:$0xff]
    %v334 = vld [vmem:[%s4 + $0x80] sm:$0xff]
    %v335 = vld [vmem:[%s4 + $0x88] sm:$0xff]
    %v336 = vld [vmem:[%s4 + $0x90] sm:$0xff]
    %v337 = vld [vmem:[%s4 + $0x98] sm:$0xff]
    %v338 = vld [vmem:[%s4 + $0xa0] sm:$0xff]
    %v339 = vld [vmem:[%s4 + $0xa8] sm:$0xff]
    %v340 = vld [vmem:[%s4 + $0xb0] sm:$0xff]
    %v341 = vld [vmem:[%s4 + $0xb8] sm:$0xff]
    %v342 = vld [vmem:[%s4 + $0xc0] sm:$0xff]
    %v343 = vld [vmem:[%s4 + $0xc8] sm:$0xff]
    %v344 = vld [vmem:[%s4 + $0xd0] sm:$0xff]
    %v345 = vld [vmem:[%s4 + $0xd8] sm:$0xff]
    %v346 = vld [vmem:[%s4 + $0xe0] sm:$0xff]
    %v347 = vld [vmem:[%s4 + $0xe8] sm:$0xff]
    %v348 = vld [vmem:[%s4 + $0xf0] sm:$0xff]
    %v349 = vld [vmem:[%s4 + $0xf8] sm:$0xff]
    %v350 = vld [vmem:[%s4 + $0x100] sm:$0xff]
    %v351 = vld [vmem:[%s4 + $0x108] sm:$0xff]
    %v352 = vld [vmem:[%s4 + $0x110] sm:$0xff]
    %v353 = vld [vmem:[%s4 + $0x118] sm:$0xff]
    %v354 = vld [vmem:[%s4 + $0x120] sm:$0xff]
    %v355 = vld [vmem:[%s4 + $0x128] sm:$0xff]
    %v356 = vld [vmem:[%s4 + $0x130] sm:$0xff]
    %v357 = vld [vmem:[%s4 + $0x138] sm:$0xff]
    %v358 = vld [vmem:[%s4 + $0x140] sm:$0xff]
    %v359 = vld [vmem:[%s4 + $0x148] sm:$0xff]
    %v360 = vld [vmem:[%s4 + $0x150] sm:$0xff]
    %v361 = vld [vmem:[%s4 + $0x158] sm:$0xff]
    %v362 = vld [vmem:[%s4 + $0x160] sm:$0xff]
    %v363 = vld [vmem:[%s4 + $0x168] sm:$0xff]
    %v364 = vld [vmem:[%s4 + $0x170] sm:$0xff]
    %v365 = vld [vmem:[%s4 + $0x178] sm:$0xff]
    %v366 = vld [vmem:[%s4 + $0x180] sm:$0xff]
    %v367 = vld [vmem:[%s4 + $0x188] sm:$0xff]
    %v368 = vld [vmem:[%s4 + $0x190] sm:$0xff]
    %v369 = vld [vmem:[%s4 + $0x198] sm:$0xff]
    %v370 = vld [vmem:[%s4 + $0x1a0] sm:$0xff]
    %v371 = vld [vmem:[%s4 + $0x1a8] sm:$0xff]
    %v372 = vld [vmem:[%s4 + $0x1b0] sm:$0xff]
    %v373 = vld [vmem:[%s4 + $0x1b8] sm:$0xff]
    %v374 = vld [vmem:[%s4 + $0x1c0] sm:$0xff]
    %v375 = vld [vmem:[%s4 + $0x1c8] sm:$0xff]
    %v376 = vld [vmem:[%s4 + $0x1d0] sm:$0xff]
    %v377 = vld [vmem:[%s4 + $0x1d8] sm:$0xff]
    %v378 = vld [vmem:[%s4 + $0x1e0] sm:$0xff]
    %v379 = vld [vmem:[%s4 + $0x1e8] sm:$0xff]
    %v380 = vld [vmem:[%s4 + $0x1f0] sm:$0xff]
    %v381 = vld [vmem:[%s4 + $0x1f8] sm:$0xff]
    %v382 = vld [vmem:[%s4 + $0x200] sm:$0xff]
    %v383 = vld [vmem:[%s4 + $0x208] sm:$0xff]
    %v384 = vld [vmem:[%s4 + $0x210] sm:$0xff]
    %v385 = vld [vmem:[%s4 + $0x218] sm:$0xff]
    %v386 = vld [vmem:[%s4 + $0x220] sm:$0xff]
    %v387 = vld [vmem:[%s4 + $0x228] sm:$0xff]
    %v388 = vld [vmem:[%s4 + $0x230] sm:$0xff]
    %v389 = vld [vmem:[%s4 + $0x238] sm:$0xff]
    %v390 = vld [vmem:[%s4 + $0x240] sm:$0xff]
    %v391 = vld [vmem:[%s4 + $0x248] sm:$0xff]
    %v392 = vld [vmem:[%s4 + $0x250] sm:$0xff]
    %v393 = vld [vmem:[%s4 + $0x258] sm:$0xff]
    %v394 = vld [vmem:[%s4 + $0x260] sm:$0xff]
    %v395 = vld [vmem:[%s4 + $0x268] sm:$0xff]
    %v396 = vld [vmem:[%s4 + $0x270] sm:$0xff]
    %v397 = vld [vmem:[%s4 + $0x278] sm:$0xff]
    %v398 = vld [vmem:[%s4 + $0x280] sm:$0xff]
    %v399 = vld [vmem:[%s4 + $0x288] sm:$0xff]
    %v400 = vld [vmem:[%s4 + $0x290] sm:$0xff]
    %v401 = vld [vmem:[%s4 + $0x298] sm:$0xff]
    %v402 = vld [vmem:[%s4 + $0x2a0] sm:$0xff]
    %v403 = vld [vmem:[%s4 + $0x2a8] sm:$0xff]
    %v404 = vld [vmem:[%s4 + $0x2b0] sm:$0xff]
    %v405 = vld [vmem:[%s4 + $0x2b8] sm:$0xff]
    %v406 = vld [vmem:[%s4 + $0x2c0] sm:$0xff]
    %v407 = vld [vmem:[%s4 + $0x2c8] sm:$0xff]
    %v408 = vld [vmem:[%s4 + $0x2d0] sm:$0xff]
    %v409 = vld [vmem:[%s4 + $0x2d8] sm:$0xff]
    %v410 = vld [vmem:[%s4 + $0x2e0] sm:$0xff]
    %v411 = vld [vmem:[%s4 + $0x2e8] sm:$0xff]
    %v412 = vld [vmem:[%s4 + $0x2f0] sm:$0xff]
    %v413 = vld [vmem:[%s4 + $0x2f8] sm:$0xff]
    %v414 = vld [vmem:[%s4 + $0x300] sm:$0xff]
    %v415 = vld [vmem:[%s4 + $0x308] sm:$0xff]
    %v416 = vld [vmem:[%s4 + $0x310] sm:$0xff]
    %v417 = vld [vmem:[%s4 + $0x318] sm:$0xff]
    %v418 = vld [vmem:[%s4 + $0x320] sm:$0xff]
    %v419 = vld [vmem:[%s4 + $0x328] sm:$0xff]
    %v420 = vld [vmem:[%s4 + $0x330] sm:$0xff]
    %v421 = vld [vmem:[%s4 + $0x338] sm:$0xff]
    %v422 = vld [vmem:[%s4 + $0x340] sm:$0xff]
    %v423 = vld [vmem:[%s4 + $0x348] sm:$0xff]
    %v424 = vld [vmem:[%s4 + $0x350] sm:$0xff]
    %v425 = vld [vmem:[%s4 + $0x358] sm:$0xff]
    %v426 = vld [vmem:[%s4 + $0x360] sm:$0xff]
    %v427 = vld [vmem:[%s4 + $0x368] sm:$0xff]
    %v428 = vld [vmem:[%s4 + $0x370] sm:$0xff]
    %v429 = vld [vmem:[%s4 + $0x378] sm:$0xff]
    %v430 = vld [vmem:[%s4 + $0x380] sm:$0xff]
    %v431 = vld [vmem:[%s4 + $0x388] sm:$0xff]
    %v432 = vld [vmem:[%s4 + $0x390] sm:$0xff]
    %v433 = vld [vmem:[%s4 + $0x398] sm:$0xff]
    %v434 = vld [vmem:[%s4 + $0x3a0] sm:$0xff]
    %v435 = vld [vmem:[%s4 + $0x3a8] sm:$0xff]
    %v436 = vld [vmem:[%s4 + $0x3b0] sm:$0xff]
    %v437 = vld [vmem:[%s4 + $0x3b8] sm:$0xff]
    %v438 = vld [vmem:[%s4 + $0x3c0] sm:$0xff]
    %v439 = vld [vmem:[%s4 + $0x3c8] sm:$0xff]
    %v440 = vld [vmem:[%s4 + $0x3d0] sm:$0xff]
    %v441 = vld [vmem:[%s4 + $0x3d8] sm:$0xff]
    %v442 = vld [vmem:[%s4 + $0x3e0] sm:$0xff]
    %v443 = vld [vmem:[%s4 + $0x3e8] sm:$0xff]
    %v444 = vld [vmem:[%s4 + $0x3f0] sm:$0xff]
    %v445 = vld [vmem:[%s4 + $0x3f8] sm:$0xff]
    %v446 = vld [vmem:[%s5] sm:$0xf]
    %v448 = vperm.slane %v446, 0
    %v449 = vperm.slane %v446, 1
    %v450 = vperm.slane %v446, 2
    %v451 = vperm.slane %v446, 3
    %v584 = vunpack.c.l.b16 %v318
    %v585 = vunpack.c.h.b16 %v318
    %v586 = vunpack.c.l.b16 %v319
    %v587 = vunpack.c.h.b16 %v319
    %v588 = vunpack.c.l.b16 %v320
    %v589 = vunpack.c.h.b16 %v320
    %v590 = vunpack.c.l.b16 %v321
    %v591 = vunpack.c.h.b16 %v321
    %v592 = vunpack.c.l.b16 %v322
    %v593 = vunpack.c.h.b16 %v322
    %v594 = vunpack.c.l.b16 %v323
    %v595 = vunpack.c.h.b16 %v323
    %v596 = vunpack.c.l.b16 %v324
    %v597 = vunpack.c.h.b16 %v324
    %v598 = vunpack.c.l.b16 %v325
    %v599 = vunpack.c.h.b16 %v325
    %v600 = vunpack.c.l.b16 %v326
    %v601 = vunpack.c.h.b16 %v326
    %v602 = vunpack.c.l.b16 %v327
    %v603 = vunpack.c.h.b16 %v327
    %v604 = vunpack.c.l.b16 %v328
    %v605 = vunpack.c.h.b16 %v328
    %v606 = vunpack.c.l.b16 %v329
    %v607 = vunpack.c.h.b16 %v329
    %v608 = vunpack.c.l.b16 %v330
    %v609 = vunpack.c.h.b16 %v330
    %v610 = vunpack.c.l.b16 %v331
    %v611 = vunpack.c.h.b16 %v331
    %v612 = vunpack.c.l.b16 %v332
    %v613 = vunpack.c.h.b16 %v332
    %v614 = vunpack.c.l.b16 %v333
    %v615 = vunpack.c.h.b16 %v333
    %v616 = vunpack.c.l.b16 %v334
    %v617 = vunpack.c.h.b16 %v334
    %v618 = vunpack.c.l.b16 %v335
    %v619 = vunpack.c.h.b16 %v335
    %v620 = vunpack.c.l.b16 %v336
    %v621 = vunpack.c.h.b16 %v336
    %v622 = vunpack.c.l.b16 %v337
    %v623 = vunpack.c.h.b16 %v337
    %v624 = vunpack.c.l.b16 %v338
    %v625 = vunpack.c.h.b16 %v338
    %v626 = vunpack.c.l.b16 %v339
    %v627 = vunpack.c.h.b16 %v339
    %v628 = vunpack.c.l.b16 %v340
    %v629 = vunpack.c.h.b16 %v340
    %v630 = vunpack.c.l.b16 %v341
    %v631 = vunpack.c.h.b16 %v341
    %v632 = vunpack.c.l.b16 %v342
    %v633 = vunpack.c.h.b16 %v342
    %v634 = vunpack.c.l.b16 %v343
    %v635 = vunpack.c.h.b16 %v343
    %v636 = vunpack.c.l.b16 %v344
    %v637 = vunpack.c.h.b16 %v344
    %v638 = vunpack.c.l.b16 %v345
    %v639 = vunpack.c.h.b16 %v345
    %v640 = vunpack.c.l.b16 %v346
    %v641 = vunpack.c.h.b16 %v346
    %v642 = vunpack.c.l.b16 %v347
    %v643 = vunpack.c.h.b16 %v347
    %v644 = vunpack.c.l.b16 %v348
    %v645 = vunpack.c.h.b16 %v348
    %v646 = vunpack.c.l.b16 %v349
    %v647 = vunpack.c.h.b16 %v349
    %v648 = vunpack.c.l.b16 %v350
    %v649 = vunpack.c.h.b16 %v350
    %v650 = vunpack.c.l.b16 %v351
    %v651 = vunpack.c.h.b16 %v351
    %v652 = vunpack.c.l.b16 %v352
    %v653 = vunpack.c.h.b16 %v352
    %v654 = vunpack.c.l.b16 %v353
    %v655 = vunpack.c.h.b16 %v353
    %v656 = vunpack.c.l.b16 %v354
    %v657 = vunpack.c.h.b16 %v354
    %v658 = vunpack.c.l.b16 %v355
    %v659 = vunpack.c.h.b16 %v355
    %v660 = vunpack.c.l.b16 %v356
    %v661 = vunpack.c.h.b16 %v356
    %v662 = vunpack.c.l.b16 %v357
    %v663 = vunpack.c.h.b16 %v357
    %v664 = vunpack.c.l.b16 %v358
    %v665 = vunpack.c.h.b16 %v358
    %v666 = vunpack.c.l.b16 %v359
    %v667 = vunpack.c.h.b16 %v359
    %v668 = vunpack.c.l.b16 %v360
    %v669 = vunpack.c.h.b16 %v360
    %v670 = vunpack.c.l.b16 %v361
    %v671 = vunpack.c.h.b16 %v361
    %v672 = vunpack.c.l.b16 %v362
    %v673 = vunpack.c.h.b16 %v362
    %v674 = vunpack.c.l.b16 %v363
    %v675 = vunpack.c.h.b16 %v363
    %v676 = vunpack.c.l.b16 %v364
    %v677 = vunpack.c.h.b16 %v364
    %v678 = vunpack.c.l.b16 %v365
    %v679 = vunpack.c.h.b16 %v365
    %v680 = vunpack.c.l.b16 %v366
    %v681 = vunpack.c.h.b16 %v366
    %v682 = vunpack.c.l.b16 %v367
    %v683 = vunpack.c.h.b16 %v367
    %v684 = vunpack.c.l.b16 %v368
    %v685 = vunpack.c.h.b16 %v368
    %v686 = vunpack.c.l.b16 %v369
    %v687 = vunpack.c.h.b16 %v369
    %v688 = vunpack.c.l.b16 %v370
    %v689 = vunpack.c.h.b16 %v370
    %v690 = vunpack.c.l.b16 %v371
    %v691 = vunpack.c.h.b16 %v371
    %v692 = vunpack.c.l.b16 %v372
    %v693 = vunpack.c.h.b16 %v372
    %v694 = vunpack.c.l.b16 %v373
    %v695 = vunpack.c.h.b16 %v373
    %v696 = vunpack.c.l.b16 %v374
    %v697 = vunpack.c.h.b16 %v374
    %v698 = vunpack.c.l.b16 %v375
    %v699 = vunpack.c.h.b16 %v375
    %v700 = vunpack.c.l.b16 %v376
    %v701 = vunpack.c.h.b16 %v376
    %v702 = vunpack.c.l.b16 %v377
    %v703 = vunpack.c.h.b16 %v377
    %v704 = vunpack.c.l.b16 %v378
    %v705 = vunpack.c.h.b16 %v378
    %v706 = vunpack.c.l.b16 %v379
    %v707 = vunpack.c.h.b16 %v379
    %v708 = vunpack.c.l.b16 %v380
    %v709 = vunpack.c.h.b16 %v380
    %v710 = vunpack.c.l.b16 %v381
    %v711 = vunpack.c.h.b16 %v381
    %v712 = vunpack.c.l.b16 %v382
    %v713 = vunpack.c.h.b16 %v382
    %v714 = vunpack.c.l.b16 %v383
    %v715 = vunpack.c.h.b16 %v383
    %v716 = vunpack.c.l.b16 %v384
    %v717 = vunpack.c.h.b16 %v384
    %v718 = vunpack.c.l.b16 %v385
    %v719 = vunpack.c.h.b16 %v385
    %v720 = vunpack.c.l.b16 %v386
    %v721 = vunpack.c.h.b16 %v386
    %v722 = vunpack.c.l.b16 %v387
    %v723 = vunpack.c.h.b16 %v387
    %v724 = vunpack.c.l.b16 %v388
    %v725 = vunpack.c.h.b16 %v388
    %v726 = vunpack.c.l.b16 %v389
    %v727 = vunpack.c.h.b16 %v389
    %v728 = vunpack.c.l.b16 %v390
    %v729 = vunpack.c.h.b16 %v390
    %v730 = vunpack.c.l.b16 %v391
    %v731 = vunpack.c.h.b16 %v391
    %v732 = vunpack.c.l.b16 %v392
    %v733 = vunpack.c.h.b16 %v392
    %v734 = vunpack.c.l.b16 %v393
    %v735 = vunpack.c.h.b16 %v393
    %v736 = vunpack.c.l.b16 %v394
    %v737 = vunpack.c.h.b16 %v394
    %v738 = vunpack.c.l.b16 %v395
    %v739 = vunpack.c.h.b16 %v395
    %v740 = vunpack.c.l.b16 %v396
    %v741 = vunpack.c.h.b16 %v396
    %v742 = vunpack.c.l.b16 %v397
    %v743 = vunpack.c.h.b16 %v397
    %v744 = vunpack.c.l.b16 %v398
    %v745 = vunpack.c.h.b16 %v398
    %v746 = vunpack.c.l.b16 %v399
    %v747 = vunpack.c.h.b16 %v399
    %v748 = vunpack.c.l.b16 %v400
    %v749 = vunpack.c.h.b16 %v400
    %v750 = vunpack.c.l.b16 %v401
    %v751 = vunpack.c.h.b16 %v401
    %v752 = vunpack.c.l.b16 %v402
    %v753 = vunpack.c.h.b16 %v402
    %v754 = vunpack.c.l.b16 %v403
    %v755 = vunpack.c.h.b16 %v403
    %v756 = vunpack.c.l.b16 %v404
    %v757 = vunpack.c.h.b16 %v404
    %v758 = vunpack.c.l.b16 %v405
    %v759 = vunpack.c.h.b16 %v405
    %v760 = vunpack.c.l.b16 %v406
    %v761 = vunpack.c.h.b16 %v406
    %v762 = vunpack.c.l.b16 %v407
    %v763 = vunpack.c.h.b16 %v407
    %v764 = vunpack.c.l.b16 %v408
    %v765 = vunpack.c.h.b16 %v408
    %v766 = vunpack.c.l.b16 %v409
    %v767 = vunpack.c.h.b16 %v409
    %v768 = vunpack.c.l.b16 %v410
    %v769 = vunpack.c.h.b16 %v410
    %v770 = vunpack.c.l.b16 %v411
    %v771 = vunpack.c.h.b16 %v411
    %v772 = vunpack.c.l.b16 %v412
    %v773 = vunpack.c.h.b16 %v412
    %v774 = vunpack.c.l.b16 %v413
    %v775 = vunpack.c.h.b16 %v413
    %v776 = vunpack.c.l.b16 %v414
    %v777 = vunpack.c.h.b16 %v414
    %v778 = vunpack.c.l.b16 %v415
    %v779 = vunpack.c.h.b16 %v415
    %v780 = vunpack.c.l.b16 %v416
    %v781 = vunpack.c.h.b16 %v416
    %v782 = vunpack.c.l.b16 %v417
    %v783 = vunpack.c.h.b16 %v417
    %v784 = vunpack.c.l.b16 %v418
    %v785 = vunpack.c.h.b16 %v418
    %v786 = vunpack.c.l.b16 %v419
    %v787 = vunpack.c.h.b16 %v419
    %v788 = vunpack.c.l.b16 %v420
    %v789 = vunpack.c.h.b16 %v420
    %v790 = vunpack.c.l.b16 %v421
    %v791 = vunpack.c.h.b16 %v421
    %v792 = vunpack.c.l.b16 %v422
    %v793 = vunpack.c.h.b16 %v422
    %v794 = vunpack.c.l.b16 %v423
    %v795 = vunpack.c.h.b16 %v423
    %v796 = vunpack.c.l.b16 %v424
    %v797 = vunpack.c.h.b16 %v424
    %v798 = vunpack.c.l.b16 %v425
    %v799 = vunpack.c.h.b16 %v425
    %v800 = vunpack.c.l.b16 %v426
    %v801 = vunpack.c.h.b16 %v426
    %v802 = vunpack.c.l.b16 %v427
    %v803 = vunpack.c.h.b16 %v427
    %v804 = vunpack.c.l.b16 %v428
    %v805 = vunpack.c.h.b16 %v428
    %v806 = vunpack.c.l.b16 %v429
    %v807 = vunpack.c.h.b16 %v429
    %v808 = vunpack.c.l.b16 %v430
    %v809 = vunpack.c.h.b16 %v430
    %v810 = vunpack.c.l.b16 %v431
    %v811 = vunpack.c.h.b16 %v431
    %v812 = vunpack.c.l.b16 %v432
    %v813 = vunpack.c.h.b16 %v432
    %v814 = vunpack.c.l.b16 %v433
    %v815 = vunpack.c.h.b16 %v433
    %v816 = vunpack.c.l.b16 %v434
    %v817 = vunpack.c.h.b16 %v434
    %v818 = vunpack.c.l.b16 %v435
    %v819 = vunpack.c.h.b16 %v435
    %v820 = vunpack.c.l.b16 %v436
    %v821 = vunpack.c.h.b16 %v436
    %v822 = vunpack.c.l.b16 %v437
    %v823 = vunpack.c.h.b16 %v437
    %v824 = vunpack.c.l.b16 %v438
    %v825 = vunpack.c.h.b16 %v438
    %v826 = vunpack.c.l.b16 %v439
    %v827 = vunpack.c.h.b16 %v439
    %v828 = vunpack.c.l.b16 %v440
    %v829 = vunpack.c.h.b16 %v440
    %v830 = vunpack.c.l.b16 %v441
    %v831 = vunpack.c.h.b16 %v441
    %v832 = vunpack.c.l.b16 %v442
    %v833 = vunpack.c.h.b16 %v442
    %v834 = vunpack.c.l.b16 %v443
    %v835 = vunpack.c.h.b16 %v443
    %v836 = vunpack.c.l.b16 %v444
    %v837 = vunpack.c.h.b16 %v444
    %v838 = vunpack.c.l.b16 %v445
    %v839 = vunpack.c.h.b16 %v445
    %v840 = vpack.c.b16 %v588, %v584
    %v841 = vpack.c.b16 %v589, %v585
    %v842 = vpack.c.b16 %v590, %v586
    %v843 = vpack.c.b16 %v591, %v587
    %v844 = vpack.c.b16 %v596, %v592
    %v845 = vpack.c.b16 %v597, %v593
    %v846 = vpack.c.b16 %v598, %v594
    %v847 = vpack.c.b16 %v599, %v595
    %v848 = vpack.c.b16 %v604, %v600
    %v849 = vpack.c.b16 %v605, %v601
    %v850 = vpack.c.b16 %v606, %v602
    %v851 = vpack.c.b16 %v607, %v603
    %v852 = vpack.c.b16 %v612, %v608
    %v853 = vpack.c.b16 %v613, %v609
    %v854 = vpack.c.b16 %v614, %v610
    %v855 = vpack.c.b16 %v615, %v611
    %v856 = vpack.c.b16 %v620, %v616
    %v857 = vpack.c.b16 %v621, %v617
    %v858 = vpack.c.b16 %v622, %v618
    %v859 = vpack.c.b16 %v623, %v619
    %v860 = vpack.c.b16 %v628, %v624
    %v861 = vpack.c.b16 %v629, %v625
    %v862 = vpack.c.b16 %v630, %v626
    %v863 = vpack.c.b16 %v631, %v627
    %v864 = vpack.c.b16 %v636, %v632
    %v865 = vpack.c.b16 %v637, %v633
    %v866 = vpack.c.b16 %v638, %v634
    %v867 = vpack.c.b16 %v639, %v635
    %v868 = vpack.c.b16 %v644, %v640
    %v869 = vpack.c.b16 %v645, %v641
    %v870 = vpack.c.b16 %v646, %v642
    %v871 = vpack.c.b16 %v647, %v643
    %v872 = vpack.c.b16 %v652, %v648
    %v873 = vpack.c.b16 %v653, %v649
    %v874 = vpack.c.b16 %v654, %v650
    %v875 = vpack.c.b16 %v655, %v651
    %v876 = vpack.c.b16 %v660, %v656
    %v877 = vpack.c.b16 %v661, %v657
    %v878 = vpack.c.b16 %v662, %v658
    %v879 = vpack.c.b16 %v663, %v659
    %v880 = vpack.c.b16 %v668, %v664
    %v881 = vpack.c.b16 %v669, %v665
    %v882 = vpack.c.b16 %v670, %v666
    %v883 = vpack.c.b16 %v671, %v667
    %v884 = vpack.c.b16 %v676, %v672
    %v885 = vpack.c.b16 %v677, %v673
    %v886 = vpack.c.b16 %v678, %v674
    %v887 = vpack.c.b16 %v679, %v675
    %v888 = vpack.c.b16 %v684, %v680
    %v889 = vpack.c.b16 %v685, %v681
    %v890 = vpack.c.b16 %v686, %v682
    %v891 = vpack.c.b16 %v687, %v683
    %v892 = vpack.c.b16 %v692, %v688
    %v893 = vpack.c.b16 %v693, %v689
    %v894 = vpack.c.b16 %v694, %v690
    %v895 = vpack.c.b16 %v695, %v691
    %v896 = vpack.c.b16 %v700, %v696
    %v897 = vpack.c.b16 %v701, %v697
    %v898 = vpack.c.b16 %v702, %v698
    %v899 = vpack.c.b16 %v703, %v699
    %v900 = vpack.c.b16 %v708, %v704
    %v901 = vpack.c.b16 %v709, %v705
    %v902 = vpack.c.b16 %v710, %v706
    %v903 = vpack.c.b16 %v711, %v707
    %v904 = vpack.c.b16 %v716, %v712
    %v905 = vpack.c.b16 %v717, %v713
    %v906 = vpack.c.b16 %v718, %v714
    %v907 = vpack.c.b16 %v719, %v715
    %v908 = vpack.c.b16 %v724, %v720
    %v909 = vpack.c.b16 %v725, %v721
    %v910 = vpack.c.b16 %v726, %v722
    %v911 = vpack.c.b16 %v727, %v723
    %v912 = vpack.c.b16 %v732, %v728
    %v913 = vpack.c.b16 %v733, %v729
    %v914 = vpack.c.b16 %v734, %v730
    %v915 = vpack.c.b16 %v735, %v731
    %v916 = vpack.c.b16 %v740, %v736
    %v917 = vpack.c.b16 %v741, %v737
    %v918 = vpack.c.b16 %v742, %v738
    %v919 = vpack.c.b16 %v743, %v739
    %v920 = vpack.c.b16 %v748, %v744
    %v921 = vpack.c.b16 %v749, %v745
    %v922 = vpack.c.b16 %v750, %v746
    %v923 = vpack.c.b16 %v751, %v747
    %v924 = vpack.c.b16 %v756, %v752
    %v925 = vpack.c.b16 %v757, %v753
    %v926 = vpack.c.b16 %v758, %v754
    %v927 = vpack.c.b16 %v759, %v755
    %v928 = vpack.c.b16 %v764, %v760
    %v929 = vpack.c.b16 %v765, %v761
    %v930 = vpack.c.b16 %v766, %v762
    %v931 = vpack.c.b16 %v767, %v763
    %v932 = vpack.c.b16 %v772, %v768
    %v933 = vpack.c.b16 %v773, %v769
    %v934 = vpack.c.b16 %v774, %v770
    %v935 = vpack.c.b16 %v775, %v771
    %v936 = vpack.c.b16 %v780, %v776
    %v937 = vpack.c.b16 %v781, %v777
    %v938 = vpack.c.b16 %v782, %v778
    %v939 = vpack.c.b16 %v783, %v779
    %v940 = vpack.c.b16 %v788, %v784
    %v941 = vpack.c.b16 %v789, %v785
    %v942 = vpack.c.b16 %v790, %v786
    %v943 = vpack.c.b16 %v791, %v787
    %v944 = vpack.c.b16 %v796, %v792
    %v945 = vpack.c.b16 %v797, %v793
    %v946 = vpack.c.b16 %v798, %v794
    %v947 = vpack.c.b16 %v799, %v795
    %v948 = vpack.c.b16 %v804, %v800
    %v949 = vpack.c.b16 %v805, %v801
    %v950 = vpack.c.b16 %v806, %v802
    %v951 = vpack.c.b16 %v807, %v803
    %v952 = vpack.c.b16 %v812, %v808
    %v953 = vpack.c.b16 %v813, %v809
    %v954 = vpack.c.b16 %v814, %v810
    %v955 = vpack.c.b16 %v815, %v811
    %v956 = vpack.c.b16 %v820, %v816
    %v957 = vpack.c.b16 %v821, %v817
    %v958 = vpack.c.b16 %v822, %v818
    %v959 = vpack.c.b16 %v823, %v819
    %v960 = vpack.c.b16 %v828, %v824
    %v961 = vpack.c.b16 %v829, %v825
    %v962 = vpack.c.b16 %v830, %v826
    %v963 = vpack.c.b16 %v831, %v827
    %v964 = vpack.c.b16 %v836, %v832
    %v965 = vpack.c.b16 %v837, %v833
    %v966 = vpack.c.b16 %v838, %v834
    %v967 = vpack.c.b16 %v839, %v835
    %1096 = vmatpush.bf16.msra.mxu0 %v868
    %1097 = vmatpush.bf16.msra.mxu0 %v864
    %1098 = vmatpush.bf16.msra.mxu0 %v860
    %1099 = vmatpush.bf16.msra.mxu0 %v856
    %1100 = vmatpush.bf16.msra.mxu0 %v852
    %1101 = vmatpush.bf16.msra.mxu0 %v848
    %1102 = vmatpush.bf16.msra.mxu0 %v844
    %1103 = vmatpush.bf16.msra.mxu0 %v840
    %1104 = vmatmul.bf16.gmra.mxu0 %v314
    %v1105 = vpop.f32.mrf.mxu0
    %v1106 = vadd.f32 %v448, %v1105
    %v1107 = vpop.f32.mrf.mxu0
    %1108 = vdwg.mxu0
    %1109 = vmatpush.bf16.msra.mxu0 %v900
    %1110 = vmatpush.bf16.msra.mxu0 %v896
    %1111 = vmatpush.bf16.msra.mxu0 %v892
    %1112 = vmatpush.bf16.msra.mxu0 %v888
    %1113 = vmatpush.bf16.msra.mxu0 %v884
    %1114 = vmatpush.bf16.msra.mxu0 %v880
    %1115 = vmatpush.bf16.msra.mxu0 %v876
    %1116 = vmatpush.bf16.msra.mxu0 %v872
    %1117 = vmatmul.bf16.gmra.mxu0 %v315
    %v1118 = vpop.f32.mrf.mxu0
    %v1119 = vadd.f32 %v1106, %v1118
    %v1120 = vpop.f32.mrf.mxu0
    %1121 = vdwg.mxu0
    %1122 = vmatpush.bf16.msra.mxu0 %v932
    %1123 = vmatpush.bf16.msra.mxu0 %v928
    %1124 = vmatpush.bf16.msra.mxu0 %v924
    %1125 = vmatpush.bf16.msra.mxu0 %v920
    %1126 = vmatpush.bf16.msra.mxu0 %v916
    %1127 = vmatpush.bf16.msra.mxu0 %v912
    %1128 = vmatpush.bf16.msra.mxu0 %v908
    %1129 = vmatpush.bf16.msra.mxu0 %v904
    %1130 = vmatmul.bf16.gmra.mxu0 %v316
    %v1131 = vpop.f32.mrf.mxu0
    %v1132 = vadd.f32 %v1119, %v1131
    %v1133 = vpop.f32.mrf.mxu0
    %1134 = vdwg.mxu0
    %1135 = vmatpush.bf16.msra.mxu0 %v964
    %1136 = vmatpush.bf16.msra.mxu0 %v960
    %1137 = vmatpush.bf16.msra.mxu0 %v956
    %1138 = vmatpush.bf16.msra.mxu0 %v952
    %1139 = vmatpush.bf16.msra.mxu0 %v948
    %1140 = vmatpush.bf16.msra.mxu0 %v944
    %1141 = vmatpush.bf16.msra.mxu0 %v940
    %1142 = vmatpush.bf16.msra.mxu0 %v936
    %1143 = vmatmul.bf16.gmra.mxu0 %v317
    %v1144 = vpop.f32.mrf.mxu0
    %v1145 = vadd.f32 %v1132, %v1144
    %v1146 = vpop.f32.mrf.mxu0
    %1147 = vdwg.mxu0
    %1148 = vmatpush.bf16.msra.mxu0 %v869
    %1149 = vmatpush.bf16.msra.mxu0 %v865
    %1150 = vmatpush.bf16.msra.mxu0 %v861
    %1151 = vmatpush.bf16.msra.mxu0 %v857
    %1152 = vmatpush.bf16.msra.mxu0 %v853
    %1153 = vmatpush.bf16.msra.mxu0 %v849
    %1154 = vmatpush.bf16.msra.mxu0 %v845
    %1155 = vmatpush.bf16.msra.mxu0 %v841
    %1156 = vmatmul.bf16.gmra.mxu0 %v314
    %v1157 = vpop.f32.mrf.mxu0
    %v1158 = vadd.f32 %v449, %v1157
    %v1159 = vpop.f32.mrf.mxu0
    %1160 = vdwg.mxu0
    %1161 = vmatpush.bf16.msra.mxu0 %v901
    %1162 = vmatpush.bf16.msra.mxu0 %v897
    %1163 = vmatpush.bf16.msra.mxu0 %v893
    %1164 = vmatpush.bf16.msra.mxu0 %v889
    %1165 = vmatpush.bf16.msra.mxu0 %v885
    %1166 = vmatpush.bf16.msra.mxu0 %v881
    %1167 = vmatpush.bf16.msra.mxu0 %v877
    %1168 = vmatpush.bf16.msra.mxu0 %v873
    %1169 = vmatmul.bf16.gmra.mxu0 %v315
    %v1170 = vpop.f32.mrf.mxu0
    %v1171 = vadd.f32 %v1158, %v1170
    %v1172 = vpop.f32.mrf.mxu0
    %1173 = vdwg.mxu0
    %1174 = vmatpush.bf16.msra.mxu0 %v933
    %1175 = vmatpush.bf16.msra.mxu0 %v929
    %1176 = vmatpush.bf16.msra.mxu0 %v925
    %1177 = vmatpush.bf16.msra.mxu0 %v921
    %1178 = vmatpush.bf16.msra.mxu0 %v917
    %1179 = vmatpush.bf16.msra.mxu0 %v913
    %1180 = vmatpush.bf16.msra.mxu0 %v909
    %1181 = vmatpush.bf16.msra.mxu0 %v905
    %1182 = vmatmul.bf16.gmra.mxu0 %v316
    %v1183 = vpop.f32.mrf.mxu0
    %v1184 = vadd.f32 %v1171, %v1183
    %v1185 = vpop.f32.mrf.mxu0
    %1186 = vdwg.mxu0
    %1187 = vmatpush.bf16.msra.mxu0 %v965
    %1188 = vmatpush.bf16.msra.mxu0 %v961
    %1189 = vmatpush.bf16.msra.mxu0 %v957
    %1190 = vmatpush.bf16.msra.mxu0 %v953
    %1191 = vmatpush.bf16.msra.mxu0 %v949
    %1192 = vmatpush.bf16.msra.mxu0 %v945
    %1193 = vmatpush.bf16.msra.mxu0 %v941
    %1194 = vmatpush.bf16.msra.mxu0 %v937
    %1195 = vmatmul.bf16.gmra.mxu0 %v317
    %v1196 = vpop.f32.mrf.mxu0
    %v1197 = vadd.f32 %v1184, %v1196
    %v1198 = vpop.f32.mrf.mxu0
    %1199 = vdwg.mxu0
    %1200 = vmatpush.bf16.msra.mxu0 %v870
    %1201 = vmatpush.bf16.msra.mxu0 %v866
    %1202 = vmatpush.bf16.msra.mxu0 %v862
    %1203 = vmatpush.bf16.msra.mxu0 %v858
    %1204 = vmatpush.bf16.msra.mxu0 %v854
    %1205 = vmatpush.bf16.msra.mxu0 %v850
    %1206 = vmatpush.bf16.msra.mxu0 %v846
    %1207 = vmatpush.bf16.msra.mxu0 %v842
    %1208 = vmatmul.bf16.gmra.mxu0 %v314
    %v1209 = vpop.f32.mrf.mxu0
    %v1210 = vadd.f32 %v450, %v1209
    %v1211 = vpop.f32.mrf.mxu0
    %1212 = vdwg.mxu0
    %1213 = vmatpush.bf16.msra.mxu0 %v902
    %1214 = vmatpush.bf16.msra.mxu0 %v898
    %1215 = vmatpush.bf16.msra.mxu0 %v894
    %1216 = vmatpush.bf16.msra.mxu0 %v890
    %1217 = vmatpush.bf16.msra.mxu0 %v886
    %1218 = vmatpush.bf16.msra.mxu0 %v882
    %1219 = vmatpush.bf16.msra.mxu0 %v878
    %1220 = vmatpush.bf16.msra.mxu0 %v874
    %1221 = vmatmul.bf16.gmra.mxu0 %v315
    %v1222 = vpop.f32.mrf.mxu0
    %v1223 = vadd.f32 %v1210, %v1222
    %v1224 = vpop.f32.mrf.mxu0
    %1225 = vdwg.mxu0
    %1226 = vmatpush.bf16.msra.mxu0 %v934
    %1227 = vmatpush.bf16.msra.mxu0 %v930
    %1228 = vmatpush.bf16.msra.mxu0 %v926
    %1229 = vmatpush.bf16.msra.mxu0 %v922
    %1230 = vmatpush.bf16.msra.mxu0 %v918
    %1231 = vmatpush.bf16.msra.mxu0 %v914
    %1232 = vmatpush.bf16.msra.mxu0 %v910
    %1233 = vmatpush.bf16.msra.mxu0 %v906
    %1234 = vmatmul.bf16.gmra.mxu0 %v316
    %v1235 = vpop.f32.mrf.mxu0
    %v1236 = vadd.f32 %v1223, %v1235
    %v1237 = vpop.f32.mrf.mxu0
    %1238 = vdwg.mxu0
    %1239 = vmatpush.bf16.msra.mxu0 %v966
    %1240 = vmatpush.bf16.msra.mxu0 %v962
    %1241 = vmatpush.bf16.msra.mxu0 %v958
    %1242 = vmatpush.bf16.msra.mxu0 %v954
    %1243 = vmatpush.bf16.msra.mxu0 %v950
    %1244 = vmatpush.bf16.msra.mxu0 %v946
    %1245 = vmatpush.bf16.msra.mxu0 %v942
    %1246 = vmatpush.bf16.msra.mxu0 %v938
    %1247 = vmatmul.bf16.gmra.mxu0 %v317
    %v1248 = vpop.f32.mrf.mxu0
    %v1249 = vadd.f32 %v1236, %v1248
    %v1250 = vpop.f32.mrf.mxu0
    %1251 = vdwg.mxu0
    %1252 = vmatpush.bf16.msra.mxu0 %v871
    %1253 = vmatpush.bf16.msra.mxu0 %v867
    %1254 = vmatpush.bf16.msra.mxu0 %v863
    %1255 = vmatpush.bf16.msra.mxu0 %v859
    %1256 = vmatpush.bf16.msra.mxu0 %v855
    %1257 = vmatpush.bf16.msra.mxu0 %v851
    %1258 = vmatpush.bf16.msra.mxu0 %v847
    %1259 = vmatpush.bf16.msra.mxu0 %v843
    %1260 = vmatmul.bf16.gmra.mxu0 %v314
    %v1261 = vpop.f32.mrf.mxu0
    %v1262 = vadd.f32 %v451, %v1261
    %v1263 = vpop.f32.mrf.mxu0
    %1264 = vdwg.mxu0
    %1265 = vmatpush.bf16.msra.mxu0 %v903
    %1266 = vmatpush.bf16.msra.mxu0 %v899
    %1267 = vmatpush.bf16.msra.mxu0 %v895
    %1268 = vmatpush.bf16.msra.mxu0 %v891
    %1269 = vmatpush.bf16.msra.mxu0 %v887
    %1270 = vmatpush.bf16.msra.mxu0 %v883
    %1271 = vmatpush.bf16.msra.mxu0 %v879
    %1272 = vmatpush.bf16.msra.mxu0 %v875
    %1273 = vmatmul.bf16.gmra.mxu0 %v315
    %v1274 = vpop.f32.mrf.mxu0
    %v1275 = vadd.f32 %v1262, %v1274
    %v1276 = vpop.f32.mrf.mxu0
    %1277 = vdwg.mxu0
    %1278 = vmatpush.bf16.msra.mxu0 %v935
    %1279 = vmatpush.bf16.msra.mxu0 %v931
    %1280 = vmatpush.bf16.msra.mxu0 %v927
    %1281 = vmatpush.bf16.msra.mxu0 %v923
    %1282 = vmatpush.bf16.msra.mxu0 %v919
    %1283 = vmatpush.bf16.msra.mxu0 %v915
    %1284 = vmatpush.bf16.msra.mxu0 %v911
    %1285 = vmatpush.bf16.msra.mxu0 %v907
    %1286 = vmatmul.bf16.gmra.mxu0 %v316
    %v1287 = vpop.f32.mrf.mxu0
    %v1288 = vadd.f32 %v1275, %v1287
    %v1289 = vpop.f32.mrf.mxu0
    %1290 = vdwg.mxu0
    %1291 = vmatpush.bf16.msra.mxu0 %v967
    %1292 = vmatpush.bf16.msra.mxu0 %v963
    %1293 = vmatpush.bf16.msra.mxu0 %v959
    %1294 = vmatpush.bf16.msra.mxu0 %v955
    %1295 = vmatpush.bf16.msra.mxu0 %v951
    %1296 = vmatpush.bf16.msra.mxu0 %v947
    %1297 = vmatpush.bf16.msra.mxu0 %v943
    %1298 = vmatpush.bf16.msra.mxu0 %v939
    %1299 = vmatmul.bf16.gmra.mxu0 %v317
    %v1300 = vpop.f32.mrf.mxu0
    %v1301 = vadd.f32 %v1288, %v1300
    %v1302 = vpop.f32.mrf.mxu0
    %1303 = vdwg.mxu0
    %v1304 = vmax.f32 %v1145, 0.0
    %v1305 = vmax.f32 %v1197, 0.0
    %v1306 = vmax.f32 %v1249, 0.0
    %v1307 = vmax.f32 %v1301, 0.0
    %v1308 = vpack.c.bf16 %v1304, %v1304
    %v1309 = vpack.c.bf16 %v1305, %v1305
    %v1310 = vpack.c.bf16 %v1306, %v1306
    %v1311 = vpack.c.bf16 %v1307, %v1307
    %v1312 = vld [vmem:[%s6] sm:$0xff]
    %v1313 = vld [vmem:[%s6 + $0x8] sm:$0xff]
    %v1314 = vld [vmem:[%s6 + $0x10] sm:$0xff]
    %v1315 = vld [vmem:[%s6 + $0x18] sm:$0xff]
    %v1316 = vld [vmem:[%s6 + $0x20] sm:$0xff]
    %v1317 = vld [vmem:[%s6 + $0x28] sm:$0xff]
    %v1318 = vld [vmem:[%s6 + $0x30] sm:$0xff]
    %v1319 = vld [vmem:[%s6 + $0x38] sm:$0xff]
    %v1320 = vld [vmem:[%s6 + $0x40] sm:$0xff]
    %v1321 = vld [vmem:[%s6 + $0x48] sm:$0xff]
    %v1322 = vld [vmem:[%s6 + $0x50] sm:$0xff]
    %v1323 = vld [vmem:[%s6 + $0x58] sm:$0xff]
    %v1324 = vld [vmem:[%s6 + $0x60] sm:$0xff]
    %v1325 = vld [vmem:[%s6 + $0x68] sm:$0xff]
    %v1326 = vld [vmem:[%s6 + $0x70] sm:$0xff]
    %v1327 = vld [vmem:[%s6 + $0x78] sm:$0xff]
    %v1328 = vld [vmem:[%s6 + $0x80] sm:$0xff]
    %v1329 = vld [vmem:[%s6 + $0x88] sm:$0xff]
    %v1330 = vld [vmem:[%s6 + $0x90] sm:$0xff]
    %v1331 = vld [vmem:[%s6 + $0x98] sm:$0xff]
    %v1332 = vld [vmem:[%s6 + $0xa0] sm:$0xff]
    %v1333 = vld [vmem:[%s6 + $0xa8] sm:$0xff]
    %v1334 = vld [vmem:[%s6 + $0xb0] sm:$0xff]
    %v1335 = vld [vmem:[%s6 + $0xb8] sm:$0xff]
    %v1336 = vld [vmem:[%s6 + $0xc0] sm:$0xff]
    %v1337 = vld [vmem:[%s6 + $0xc8] sm:$0xff]
    %v1338 = vld [vmem:[%s6 + $0xd0] sm:$0xff]
    %v1339 = vld [vmem:[%s6 + $0xd8] sm:$0xff]
    %v1340 = vld [vmem:[%s6 + $0xe0] sm:$0xff]
    %v1341 = vld [vmem:[%s6 + $0xe8] sm:$0xff]
    %v1342 = vld [vmem:[%s6 + $0xf0] sm:$0xff]
    %v1343 = vld [vmem:[%s6 + $0xf8] sm:$0xff]
    %v1344 = vld [vmem:[%s6 + $0x100] sm:$0xff]
    %v1345 = vld [vmem:[%s6 + $0x108] sm:$0xff]
    %v1346 = vld [vmem:[%s6 + $0x110] sm:$0xff]
    %v1347 = vld [vmem:[%s6 + $0x118] sm:$0xff]
    %v1348 = vld [vmem:[%s6 + $0x120] sm:$0xff]
    %v1349 = vld [vmem:[%s6 + $0x128] sm:$0xff]
    %v1350 = vld [vmem:[%s6 + $0x130] sm:$0xff]
    %v1351 = vld [vmem:[%s6 + $0x138] sm:$0xff]
    %v1352 = vld [vmem:[%s6 + $0x140] sm:$0xff]
    %v1353 = vld [vmem:[%s6 + $0x148] sm:$0xff]
    %v1354 = vld [vmem:[%s6 + $0x150] sm:$0xff]
    %v1355 = vld [vmem:[%s6 + $0x158] sm:$0xff]
    %v1356 = vld [vmem:[%s6 + $0x160] sm:$0xff]
    %v1357 = vld [vmem:[%s6 + $0x168] sm:$0xff]
    %v1358 = vld [vmem:[%s6 + $0x170] sm:$0xff]
    %v1359 = vld [vmem:[%s6 + $0x178] sm:$0xff]
    %v1360 = vld [vmem:[%s6 + $0x180] sm:$0xff]
    %v1361 = vld [vmem:[%s6 + $0x188] sm:$0xff]
    %v1362 = vld [vmem:[%s6 + $0x190] sm:$0xff]
    %v1363 = vld [vmem:[%s6 + $0x198] sm:$0xff]
    %v1364 = vld [vmem:[%s6 + $0x1a0] sm:$0xff]
    %v1365 = vld [vmem:[%s6 + $0x1a8] sm:$0xff]
    %v1366 = vld [vmem:[%s6 + $0x1b0] sm:$0xff]
    %v1367 = vld [vmem:[%s6 + $0x1b8] sm:$0xff]
    %v1368 = vld [vmem:[%s6 + $0x1c0] sm:$0xff]
    %v1369 = vld [vmem:[%s6 + $0x1c8] sm:$0xff]
    %v1370 = vld [vmem:[%s6 + $0x1d0] sm:$0xff]
    %v1371 = vld [vmem:[%s6 + $0x1d8] sm:$0xff]
    %v1372 = vld [vmem:[%s6 + $0x1e0] sm:$0xff]
    %v1373 = vld [vmem:[%s6 + $0x1e8] sm:$0xff]
    %v1374 = vld [vmem:[%s6 + $0x1f0] sm:$0xff]
    %v1375 = vld [vmem:[%s6 + $0x1f8] sm:$0xff]
    %v1376 = vld [vmem:[%s7] sm:$0x3]
    %v1378 = vperm.slane %v1376, 0
    %v1379 = vperm.slane %v1376, 1
    %v1446 = vunpack.c.l.b16 %v1312
    %v1447 = vunpack.c.h.b16 %v1312
    %v1448 = vunpack.c.l.b16 %v1313
    %v1449 = vunpack.c.h.b16 %v1313
    %v1450 = vunpack.c.l.b16 %v1314
    %v1451 = vunpack.c.h.b16 %v1314
    %v1452 = vunpack.c.l.b16 %v1315
    %v1453 = vunpack.c.h.b16 %v1315
    %v1454 = vunpack.c.l.b16 %v1316
    %v1455 = vunpack.c.h.b16 %v1316
    %v1456 = vunpack.c.l.b16 %v1317
    %v1457 = vunpack.c.h.b16 %v1317
    %v1458 = vunpack.c.l.b16 %v1318
    %v1459 = vunpack.c.h.b16 %v1318
    %v1460 = vunpack.c.l.b16 %v1319
    %v1461 = vunpack.c.h.b16 %v1319
    %v1462 = vunpack.c.l.b16 %v1320
    %v1463 = vunpack.c.h.b16 %v1320
    %v1464 = vunpack.c.l.b16 %v1321
    %v1465 = vunpack.c.h.b16 %v1321
    %v1466 = vunpack.c.l.b16 %v1322
    %v1467 = vunpack.c.h.b16 %v1322
    %v1468 = vunpack.c.l.b16 %v1323
    %v1469 = vunpack.c.h.b16 %v1323
    %v1470 = vunpack.c.l.b16 %v1324
    %v1471 = vunpack.c.h.b16 %v1324
    %v1472 = vunpack.c.l.b16 %v1325
    %v1473 = vunpack.c.h.b16 %v1325
    %v1474 = vunpack.c.l.b16 %v1326
    %v1475 = vunpack.c.h.b16 %v1326
    %v1476 = vunpack.c.l.b16 %v1327
    %v1477 = vunpack.c.h.b16 %v1327
    %v1478 = vunpack.c.l.b16 %v1328
    %v1479 = vunpack.c.h.b16 %v1328
    %v1480 = vunpack.c.l.b16 %v1329
    %v1481 = vunpack.c.h.b16 %v1329
    %v1482 = vunpack.c.l.b16 %v1330
    %v1483 = vunpack.c.h.b16 %v1330
    %v1484 = vunpack.c.l.b16 %v1331
    %v1485 = vunpack.c.h.b16 %v1331
    %v1486 = vunpack.c.l.b16 %v1332
    %v1487 = vunpack.c.h.b16 %v1332
    %v1488 = vunpack.c.l.b16 %v1333
    %v1489 = vunpack.c.h.b16 %v1333
    %v1490 = vunpack.c.l.b16 %v1334
    %v1491 = vunpack.c.h.b16 %v1334
    %v1492 = vunpack.c.l.b16 %v1335
    %v1493 = vunpack.c.h.b16 %v1335
    %v1494 = vunpack.c.l.b16 %v1336
    %v1495 = vunpack.c.h.b16 %v1336
    %v1496 = vunpack.c.l.b16 %v1337
    %v1497 = vunpack.c.h.b16 %v1337
    %v1498 = vunpack.c.l.b16 %v1338
    %v1499 = vunpack.c.h.b16 %v1338
    %v1500 = vunpack.c.l.b16 %v1339
    %v1501 = vunpack.c.h.b16 %v1339
    %v1502 = vunpack.c.l.b16 %v1340
    %v1503 = vunpack.c.h.b16 %v1340
    %v1504 = vunpack.c.l.b16 %v1341
    %v1505 = vunpack.c.h.b16 %v1341
    %v1506 = vunpack.c.l.b16 %v1342
    %v1507 = vunpack.c.h.b16 %v1342
    %v1508 = vunpack.c.l.b16 %v1343
    %v1509 = vunpack.c.h.b16 %v1343
    %v1510 = vunpack.c.l.b16 %v1344
    %v1511 = vunpack.c.h.b16 %v1344
    %v1512 = vunpack.c.l.b16 %v1345
    %v1513 = vunpack.c.h.b16 %v1345
    %v1514 = vunpack.c.l.b16 %v1346
    %v1515 = vunpack.c.h.b16 %v1346
    %v1516 = vunpack.c.l.b16 %v1347
    %v1517 = vunpack.c.h.b16 %v1347
    %v1518 = vunpack.c.l.b16 %v1348
    %v1519 = vunpack.c.h.b16 %v1348
    %v1520 = vunpack.c.l.b16 %v1349
    %v1521 = vunpack.c.h.b16 %v1349
    %v1522 = vunpack.c.l.b16 %v1350
    %v1523 = vunpack.c.h.b16 %v1350
    %v1524 = vunpack.c.l.b16 %v1351
    %v1525 = vunpack.c.h.b16 %v1351
    %v1526 = vunpack.c.l.b16 %v1352
    %v1527 = vunpack.c.h.b16 %v1352
    %v1528 = vunpack.c.l.b16 %v1353
    %v1529 = vunpack.c.h.b16 %v1353
    %v1530 = vunpack.c.l.b16 %v1354
    %v1531 = vunpack.c.h.b16 %v1354
    %v1532 = vunpack.c.l.b16 %v1355
    %v1533 = vunpack.c.h.b16 %v1355
    %v1534 = vunpack.c.l.b16 %v1356
    %v1535 = vunpack.c.h.b16 %v1356
    %v1536 = vunpack.c.l.b16 %v1357
    %v1537 = vunpack.c.h.b16 %v1357
    %v1538 = vunpack.c.l.b16 %v1358
    %v1539 = vunpack.c.h.b16 %v1358
    %v1540 = vunpack.c.l.b16 %v1359
    %v1541 = vunpack.c.h.b16 %v1359
    %v1542 = vunpack.c.l.b16 %v1360
    %v1543 = vunpack.c.h.b16 %v1360
    %v1544 = vunpack.c.l.b16 %v1361
    %v1545 = vunpack.c.h.b16 %v1361
    %v1546 = vunpack.c.l.b16 %v1362
    %v1547 = vunpack.c.h.b16 %v1362
    %v1548 = vunpack.c.l.b16 %v1363
    %v1549 = vunpack.c.h.b16 %v1363
    %v1550 = vunpack.c.l.b16 %v1364
    %v1551 = vunpack.c.h.b16 %v1364
    %v1552 = vunpack.c.l.b16 %v1365
    %v1553 = vunpack.c.h.b16 %v1365
    %v1554 = vunpack.c.l.b16 %v1366
    %v1555 = vunpack.c.h.b16 %v1366
    %v1556 = vunpack.c.l.b16 %v1367
    %v1557 = vunpack.c.h.b16 %v1367
    %v1558 = vunpack.c.l.b16 %v1368
    %v1559 = vunpack.c.h.b16 %v1368
    %v1560 = vunpack.c.l.b16 %v1369
    %v1561 = vunpack.c.h.b16 %v1369
    %v1562 = vunpack.c.l.b16 %v1370
    %v1563 = vunpack.c.h.b16 %v1370
    %v1564 = vunpack.c.l.b16 %v1371
    %v1565 = vunpack.c.h.b16 %v1371
    %v1566 = vunpack.c.l.b16 %v1372
    %v1567 = vunpack.c.h.b16 %v1372
    %v1568 = vunpack.c.l.b16 %v1373
    %v1569 = vunpack.c.h.b16 %v1373
    %v1570 = vunpack.c.l.b16 %v1374
    %v1571 = vunpack.c.h.b16 %v1374
    %v1572 = vunpack.c.l.b16 %v1375
    %v1573 = vunpack.c.h.b16 %v1375
    %v1574 = vpack.c.b16 %v1448, %v1446
    %v1575 = vpack.c.b16 %v1449, %v1447
    %v1576 = vpack.c.b16 %v1452, %v1450
    %v1577 = vpack.c.b16 %v1453, %v1451
    %v1578 = vpack.c.b16 %v1456, %v1454
    %v1579 = vpack.c.b16 %v1457, %v1455
    %v1580 = vpack.c.b16 %v1460, %v1458
    %v1581 = vpack.c.b16 %v1461, %v1459
    %v1582 = vpack.c.b16 %v1464, %v1462
    %v1583 = vpack.c.b16 %v1465, %v1463
    %v1584 = vpack.c.b16 %v1468, %v1466
    %v1585 = vpack.c.b16 %v1469, %v1467
    %v1586 = vpack.c.b16 %v1472, %v1470
    %v1587 = vpack.c.b16 %v1473, %v1471
    %v1588 = vpack.c.b16 %v1476, %v1474
    %v1589 = vpack.c.b16 %v1477, %v1475
    %v1590 = vpack.c.b16 %v1480, %v1478
    %v1591 = vpack.c.b16 %v1481, %v1479
    %v1592 = vpack.c.b16 %v1484, %v1482
    %v1593 = vpack.c.b16 %v1485, %v1483
    %v1594 = vpack.c.b16 %v1488, %v1486
    %v1595 = vpack.c.b16 %v1489, %v1487
    %v1596 = vpack.c.b16 %v1492, %v1490
    %v1597 = vpack.c.b16 %v1493, %v1491
    %v1598 = vpack.c.b16 %v1496, %v1494
    %v1599 = vpack.c.b16 %v1497, %v1495
    %v1600 = vpack.c.b16 %v1500, %v1498
    %v1601 = vpack.c.b16 %v1501, %v1499
    %v1602 = vpack.c.b16 %v1504, %v1502
    %v1603 = vpack.c.b16 %v1505, %v1503
    %v1604 = vpack.c.b16 %v1508, %v1506
    %v1605 = vpack.c.b16 %v1509, %v1507
    %v1606 = vpack.c.b16 %v1512, %v1510
    %v1607 = vpack.c.b16 %v1513, %v1511
    %v1608 = vpack.c.b16 %v1516, %v1514
    %v1609 = vpack.c.b16 %v1517, %v1515
    %v1610 = vpack.c.b16 %v1520, %v1518
    %v1611 = vpack.c.b16 %v1521, %v1519
    %v1612 = vpack.c.b16 %v1524, %v1522
    %v1613 = vpack.c.b16 %v1525, %v1523
    %v1614 = vpack.c.b16 %v1528, %v1526
    %v1615 = vpack.c.b16 %v1529, %v1527
    %v1616 = vpack.c.b16 %v1532, %v1530
    %v1617 = vpack.c.b16 %v1533, %v1531
    %v1618 = vpack.c.b16 %v1536, %v1534
    %v1619 = vpack.c.b16 %v1537, %v1535
    %v1620 = vpack.c.b16 %v1540, %v1538
    %v1621 = vpack.c.b16 %v1541, %v1539
    %v1622 = vpack.c.b16 %v1544, %v1542
    %v1623 = vpack.c.b16 %v1545, %v1543
    %v1624 = vpack.c.b16 %v1548, %v1546
    %v1625 = vpack.c.b16 %v1549, %v1547
    %v1626 = vpack.c.b16 %v1552, %v1550
    %v1627 = vpack.c.b16 %v1553, %v1551
    %v1628 = vpack.c.b16 %v1556, %v1554
    %v1629 = vpack.c.b16 %v1557, %v1555
    %v1630 = vpack.c.b16 %v1560, %v1558
    %v1631 = vpack.c.b16 %v1561, %v1559
    %v1632 = vpack.c.b16 %v1564, %v1562
    %v1633 = vpack.c.b16 %v1565, %v1563
    %v1634 = vpack.c.b16 %v1568, %v1566
    %v1635 = vpack.c.b16 %v1569, %v1567
    %v1636 = vpack.c.b16 %v1572, %v1570
    %v1637 = vpack.c.b16 %v1573, %v1571
    %1702 = vmatpush.bf16.msra.mxu0 %v1588
    %1703 = vmatpush.bf16.msra.mxu0 %v1586
    %1704 = vmatpush.bf16.msra.mxu0 %v1584
    %1705 = vmatpush.bf16.msra.mxu0 %v1582
    %1706 = vmatpush.bf16.msra.mxu0 %v1580
    %1707 = vmatpush.bf16.msra.mxu0 %v1578
    %1708 = vmatpush.bf16.msra.mxu0 %v1576
    %1709 = vmatpush.bf16.msra.mxu0 %v1574
    %1710 = vmatmul.bf16.gmra.mxu0 %v1308
    %v1711 = vpop.f32.mrf.mxu0
    %v1712 = vadd.f32 %v1378, %v1711
    %v1713 = vpop.f32.mrf.mxu0
    %1714 = vdwg.mxu0
    %1715 = vmatpush.bf16.msra.mxu0 %v1604
    %1716 = vmatpush.bf16.msra.mxu0 %v1602
    %1717 = vmatpush.bf16.msra.mxu0 %v1600
    %1718 = vmatpush.bf16.msra.mxu0 %v1598
    %1719 = vmatpush.bf16.msra.mxu0 %v1596
    %1720 = vmatpush.bf16.msra.mxu0 %v1594
    %1721 = vmatpush.bf16.msra.mxu0 %v1592
    %1722 = vmatpush.bf16.msra.mxu0 %v1590
    %1723 = vmatmul.bf16.gmra.mxu0 %v1309
    %v1724 = vpop.f32.mrf.mxu0
    %v1725 = vadd.f32 %v1712, %v1724
    %v1726 = vpop.f32.mrf.mxu0
    %1727 = vdwg.mxu0
    %1728 = vmatpush.bf16.msra.mxu0 %v1620
    %1729 = vmatpush.bf16.msra.mxu0 %v1618
    %1730 = vmatpush.bf16.msra.mxu0 %v1616
    %1731 = vmatpush.bf16.msra.mxu0 %v1614
    %1732 = vmatpush.bf16.msra.mxu0 %v1612
    %1733 = vmatpush.bf16.msra.mxu0 %v1610
    %1734 = vmatpush.bf16.msra.mxu0 %v1608
    %1735 = vmatpush.bf16.msra.mxu0 %v1606
    %1736 = vmatmul.bf16.gmra.mxu0 %v1310
    %v1737 = vpop.f32.mrf.mxu0
    %v1738 = vadd.f32 %v1725, %v1737
    %v1739 = vpop.f32.mrf.mxu0
    %1740 = vdwg.mxu0
    %1741 = vmatpush.bf16.msra.mxu0 %v1636
    %1742 = vmatpush.bf16.msra.mxu0 %v1634
    %1743 = vmatpush.bf16.msra.mxu0 %v1632
    %1744 = vmatpush.bf16.msra.mxu0 %v1630
    %1745 = vmatpush.bf16.msra.mxu0 %v1628
    %1746 = vmatpush.bf16.msra.mxu0 %v1626
    %1747 = vmatpush.bf16.msra.mxu0 %v1624
    %1748 = vmatpush.bf16.msra.mxu0 %v1622
    %1749 = vmatmul.bf16.gmra.mxu0 %v1311
    %v1750 = vpop.f32.mrf.mxu0
    %v1751 = vadd.f32 %v1738, %v1750
    %v1752 = vpop.f32.mrf.mxu0
    %1753 = vdwg.mxu0
    %1754 = vmatpush.bf16.msra.mxu0 %v1589
    %1755 = vmatpush.bf16.msra.mxu0 %v1587
    %1756 = vmatpush.bf16.msra.mxu0 %v1585
    %1757 = vmatpush.bf16.msra.mxu0 %v1583
    %1758 = vmatpush.bf16.msra.mxu0 %v1581
    %1759 = vmatpush.bf16.msra.mxu0 %v1579
    %1760 = vmatpush.bf16.msra.mxu0 %v1577
    %1761 = vmatpush.bf16.msra.mxu0 %v1575
    %1762 = vmatmul.bf16.gmra.mxu0 %v1308
    %v1763 = vpop.f32.mrf.mxu0
    %v1764 = vadd.f32 %v1379, %v1763
    %v1765 = vpop.f32.mrf.mxu0
    %1766 = vdwg.mxu0
    %1767 = vmatpush.bf16.msra.mxu0 %v1605
    %1768 = vmatpush.bf16.msra.mxu0 %v1603
    %1769 = vmatpush.bf16.msra.mxu0 %v1601
    %1770 = vmatpush.bf16.msra.mxu0 %v1599
    %1771 = vmatpush.bf16.msra.mxu0 %v1597
    %1772 = vmatpush.bf16.msra.mxu0 %v1595
    %1773 = vmatpush.bf16.msra.mxu0 %v1593
    %1774 = vmatpush.bf16.msra.mxu0 %v1591
    %1775 = vmatmul.bf16.gmra.mxu0 %v1309
    %v1776 = vpop.f32.mrf.mxu0
    %v1777 = vadd.f32 %v1764, %v1776
    %v1778 = vpop.f32.mrf.mxu0
    %1779 = vdwg.mxu0
    %1780 = vmatpush.bf16.msra.mxu0 %v1621
    %1781 = vmatpush.bf16.msra.mxu0 %v1619
    %1782 = vmatpush.bf16.msra.mxu0 %v1617
    %1783 = vmatpush.bf16.msra.mxu0 %v1615
    %1784 = vmatpush.bf16.msra.mxu0 %v1613
    %1785 = vmatpush.bf16.msra.mxu0 %v1611
    %1786 = vmatpush.bf16.msra.mxu0 %v1609
    %1787 = vmatpush.bf16.msra.mxu0 %v1607
    %1788 = vmatmul.bf16.gmra.mxu0 %v1310
    %v1789 = vpop.f32.mrf.mxu0
    %v1790 = vadd.f32 %v1777, %v1789
    %v1791 = vpop.f32.mrf.mxu0
    %1792 = vdwg.mxu0
    %1793 = vmatpush.bf16.msra.mxu0 %v1637
    %1794 = vmatpush.bf16.msra.mxu0 %v1635
    %1795 = vmatpush.bf16.msra.mxu0 %v1633
    %1796 = vmatpush.bf16.msra.mxu0 %v1631
    %1797 = vmatpush.bf16.msra.mxu0 %v1629
    %1798 = vmatpush.bf16.msra.mxu0 %v1627
    %1799 = vmatpush.bf16.msra.mxu0 %v1625
    %1800 = vmatpush.bf16.msra.mxu0 %v1623
    %1801 = vmatmul.bf16.gmra.mxu0 %v1311
    %v1802 = vpop.f32.mrf.mxu0
    %v1803 = vadd.f32 %v1790, %v1802
    %v1804 = vpop.f32.mrf.mxu0
    %1805 = vdwg.mxu0
    %v1806 = vmul.f32 %v1803, 0.5
    %v1807 = vmul.f32 %v1806, 1.442695
    %v1808 = vpow.pop %v1807
    %v1809 = vmul.f32 %v1808, %v1808
    %v1810 = vld [vmem:[%s1] sm:$0xff]
    %v1811 = vmul.f32 %v1808, %v1810
    %v1812 = vadd.f32 %v1751, %v1811
    %v1813 = vpack.c.bf16 %v1812, %v1812
    %v1814 = vld [vmem:[%s8] sm:$0xff]
    %v1815 = vld [vmem:[%s8 + $0x8] sm:$0xff]
    %v1816 = vld [vmem:[%s8 + $0x10] sm:$0xff]
    %v1817 = vld [vmem:[%s8 + $0x18] sm:$0xff]
    %v1818 = vld [vmem:[%s8 + $0x20] sm:$0xff]
    %v1819 = vld [vmem:[%s8 + $0x28] sm:$0xff]
    %v1820 = vld [vmem:[%s8 + $0x30] sm:$0xff]
    %v1821 = vld [vmem:[%s8 + $0x38] sm:$0xff]
    %v1822 = vld [vmem:[%s8 + $0x40] sm:$0xff]
    %v1823 = vld [vmem:[%s8 + $0x48] sm:$0xff]
    %v1824 = vld [vmem:[%s8 + $0x50] sm:$0xff]
    %v1825 = vld [vmem:[%s8 + $0x58] sm:$0xff]
    %v1826 = vld [vmem:[%s8 + $0x60] sm:$0xff]
    %v1827 = vld [vmem:[%s8 + $0x68] sm:$0xff]
    %v1828 = vld [vmem:[%s8 + $0x70] sm:$0xff]
    %v1829 = vld [vmem:[%s8 + $0x78] sm:$0xff]
    %v1830 = vld [vmem:[%s8 + $0x80] sm:$0xff]
    %v1831 = vld [vmem:[%s8 + $0x88] sm:$0xff]
    %v1832 = vld [vmem:[%s8 + $0x90] sm:$0xff]
    %v1833 = vld [vmem:[%s8 + $0x98] sm:$0xff]
    %v1834 = vld [vmem:[%s8 + $0xa0] sm:$0xff]
    %v1835 = vld [vmem:[%s8 + $0xa8] sm:$0xff]
    %v1836 = vld [vmem:[%s8 + $0xb0] sm:$0xff]
    %v1837 = vld [vmem:[%s8 + $0xb8] sm:$0xff]
    %v1838 = vld [vmem:[%s8 + $0xc0] sm:$0xff]
    %v1839 = vld [vmem:[%s8 + $0xc8] sm:$0xff]
    %v1840 = vld [vmem:[%s8 + $0xd0] sm:$0xff]
    %v1841 = vld [vmem:[%s8 + $0xd8] sm:$0xff]
    %v1842 = vld [vmem:[%s8 + $0xe0] sm:$0xff]
    %v1843 = vld [vmem:[%s8 + $0xe8] sm:$0xff]
    %v1844 = vld [vmem:[%s8 + $0xf0] sm:$0xff]
    %v1845 = vld [vmem:[%s8 + $0xf8] sm:$0xff]
    %v1846 = vld [vmem:[%s9] sm:$0xf]
    %v1848 = vperm.slane %v1846, 0
    %v1849 = vperm.slane %v1846, 1
    %v1850 = vperm.slane %v1846, 2
    %v1851 = vperm.slane %v1846, 3
    %v1888 = vunpack.c.l.b16 %v1814
    %v1889 = vunpack.c.h.b16 %v1814
    %v1890 = vunpack.c.l.b16 %v1815
    %v1891 = vunpack.c.h.b16 %v1815
    %v1892 = vunpack.c.l.b16 %v1816
    %v1893 = vunpack.c.h.b16 %v1816
    %v1894 = vunpack.c.l.b16 %v1817
    %v1895 = vunpack.c.h.b16 %v1817
    %v1896 = vunpack.c.l.b16 %v1818
    %v1897 = vunpack.c.h.b16 %v1818
    %v1898 = vunpack.c.l.b16 %v1819
    %v1899 = vunpack.c.h.b16 %v1819
    %v1900 = vunpack.c.l.b16 %v1820
    %v1901 = vunpack.c.h.b16 %v1820
    %v1902 = vunpack.c.l.b16 %v1821
    %v1903 = vunpack.c.h.b16 %v1821
    %v1904 = vunpack.c.l.b16 %v1822
    %v1905 = vunpack.c.h.b16 %v1822
    %v1906 = vunpack.c.l.b16 %v1823
    %v1907 = vunpack.c.h.b16 %v1823
    %v1908 = vunpack.c.l.b16 %v1824
    %v1909 = vunpack.c.h.b16 %v1824
    %v1910 = vunpack.c.l.b16 %v1825
    %v1911 = vunpack.c.h.b16 %v1825
    %v1912 = vunpack.c.l.b16 %v1826
    %v1913 = vunpack.c.h.b16 %v1826
    %v1914 = vunpack.c.l.b16 %v1827
    %v1915 = vunpack.c.h.b16 %v1827
    %v1916 = vunpack.c.l.b16 %v1828
    %v1917 = vunpack.c.h.b16 %v1828
    %v1918 = vunpack.c.l.b16 %v1829
    %v1919 = vunpack.c.h.b16 %v1829
    %v1920 = vunpack.c.l.b16 %v1830
    %v1921 = vunpack.c.h.b16 %v1830
    %v1922 = vunpack.c.l.b16 %v1831
    %v1923 = vunpack.c.h.b16 %v1831
    %v1924 = vunpack.c.l.b16 %v1832
    %v1925 = vunpack.c.h.b16 %v1832
    %v1926 = vunpack.c.l.b16 %v1833
    %v1927 = vunpack.c.h.b16 %v1833
    %v1928 = vunpack.c.l.b16 %v1834
    %v1929 = vunpack.c.h.b16 %v1834
    %v1930 = vunpack.c.l.b16 %v1835
    %v1931 = vunpack.c.h.b16 %v1835
    %v1932 = vunpack.c.l.b16 %v1836
    %v1933 = vunpack.c.h.b16 %v1836
    %v1934 = vunpack.c.l.b16 %v1837
    %v1935 = vunpack.c.h.b16 %v1837
    %v1936 = vunpack.c.l.b16 %v1838
    %v1937 = vunpack.c.h.b16 %v1838
    %v1938 = vunpack.c.l.b16 %v1839
    %v1939 = vunpack.c.h.b16 %v1839
    %v1940 = vunpack.c.l.b16 %v1840
    %v1941 = vunpack.c.h.b16 %v1840
    %v1942 = vunpack.c.l.b16 %v1841
    %v1943 = vunpack.c.h.b16 %v1841
    %v1944 = vunpack.c.l.b16 %v1842
    %v1945 = vunpack.c.h.b16 %v1842
    %v1946 = vunpack.c.l.b16 %v1843
    %v1947 = vunpack.c.h.b16 %v1843
    %v1948 = vunpack.c.l.b16 %v1844
    %v1949 = vunpack.c.h.b16 %v1844
    %v1950 = vunpack.c.l.b16 %v1845
    %v1951 = vunpack.c.h.b16 %v1845
    %v1952 = vpack.c.b16 %v1892, %v1888
    %v1953 = vpack.c.b16 %v1893, %v1889
    %v1954 = vpack.c.b16 %v1894, %v1890
    %v1955 = vpack.c.b16 %v1895, %v1891
    %v1956 = vpack.c.b16 %v1900, %v1896
    %v1957 = vpack.c.b16 %v1901, %v1897
    %v1958 = vpack.c.b16 %v1902, %v1898
    %v1959 = vpack.c.b16 %v1903, %v1899
    %v1960 = vpack.c.b16 %v1908, %v1904
    %v1961 = vpack.c.b16 %v1909, %v1905
    %v1962 = vpack.c.b16 %v1910, %v1906
    %v1963 = vpack.c.b16 %v1911, %v1907
    %v1964 = vpack.c.b16 %v1916, %v1912
    %v1965 = vpack.c.b16 %v1917, %v1913
    %v1966 = vpack.c.b16 %v1918, %v1914
    %v1967 = vpack.c.b16 %v1919, %v1915
    %v1968 = vpack.c.b16 %v1924, %v1920
    %v1969 = vpack.c.b16 %v1925, %v1921
    %v1970 = vpack.c.b16 %v1926, %v1922
    %v1971 = vpack.c.b16 %v1927, %v1923
    %v1972 = vpack.c.b16 %v1932, %v1928
    %v1973 = vpack.c.b16 %v1933, %v1929
    %v1974 = vpack.c.b16 %v1934, %v1930
    %v1975 = vpack.c.b16 %v1935, %v1931
    %v1976 = vpack.c.b16 %v1940, %v1936
    %v1977 = vpack.c.b16 %v1941, %v1937
    %v1978 = vpack.c.b16 %v1942, %v1938
    %v1979 = vpack.c.b16 %v1943, %v1939
    %v1980 = vpack.c.b16 %v1948, %v1944
    %v1981 = vpack.c.b16 %v1949, %v1945
    %v1982 = vpack.c.b16 %v1950, %v1946
    %v1983 = vpack.c.b16 %v1951, %v1947
    %2016 = vmatpush.bf16.msra.mxu0 %v1980
    %2017 = vmatpush.bf16.msra.mxu0 %v1976
    %2018 = vmatpush.bf16.msra.mxu0 %v1972
    %2019 = vmatpush.bf16.msra.mxu0 %v1968
    %2020 = vmatpush.bf16.msra.mxu0 %v1964
    %2021 = vmatpush.bf16.msra.mxu0 %v1960
    %2022 = vmatpush.bf16.msra.mxu0 %v1956
    %2023 = vmatpush.bf16.msra.mxu0 %v1952
    %2024 = vmatmul.bf16.gmra.mxu0 %v1813
    %v2025 = vpop.f32.mrf.mxu0
    %v2026 = vadd.f32 %v1848, %v2025
    %v2027 = vpop.f32.mrf.mxu0
    %2028 = vdwg.mxu0
    %2029 = vmatpush.bf16.msra.mxu0 %v1981
    %2030 = vmatpush.bf16.msra.mxu0 %v1977
    %2031 = vmatpush.bf16.msra.mxu0 %v1973
    %2032 = vmatpush.bf16.msra.mxu0 %v1969
    %2033 = vmatpush.bf16.msra.mxu0 %v1965
    %2034 = vmatpush.bf16.msra.mxu0 %v1961
    %2035 = vmatpush.bf16.msra.mxu0 %v1957
    %2036 = vmatpush.bf16.msra.mxu0 %v1953
    %2037 = vmatmul.bf16.gmra.mxu0 %v1813
    %v2038 = vpop.f32.mrf.mxu0
    %v2039 = vadd.f32 %v1849, %v2038
    %v2040 = vpop.f32.mrf.mxu0
    %2041 = vdwg.mxu0
    %2042 = vmatpush.bf16.msra.mxu0 %v1982
    %2043 = vmatpush.bf16.msra.mxu0 %v1978
    %2044 = vmatpush.bf16.msra.mxu0 %v1974
    %2045 = vmatpush.bf16.msra.mxu0 %v1970
    %2046 = vmatpush.bf16.msra.mxu0 %v1966
    %2047 = vmatpush.bf16.msra.mxu0 %v1962
    %2048 = vmatpush.bf16.msra.mxu0 %v1958
    %2049 = vmatpush.bf16.msra.mxu0 %v1954
    %2050 = vmatmul.bf16.gmra.mxu0 %v1813
    %v2051 = vpop.f32.mrf.mxu0
    %v2052 = vadd.f32 %v1850, %v2051
    %v2053 = vpop.f32.mrf.mxu0
    %2054 = vdwg.mxu0
    %2055 = vmatpush.bf16.msra.mxu0 %v1983
    %2056 = vmatpush.bf16.msra.mxu0 %v1979
    %2057 = vmatpush.bf16.msra.mxu0 %v1975
    %2058 = vmatpush.bf16.msra.mxu0 %v1971
    %2059 = vmatpush.bf16.msra.mxu0 %v1967
    %2060 = vmatpush.bf16.msra.mxu0 %v1963
    %2061 = vmatpush.bf16.msra.mxu0 %v1959
    %2062 = vmatpush.bf16.msra.mxu0 %v1955
    %2063 = vmatmul.bf16.gmra.mxu0 %v1813
    %v2064 = vpop.f32.mrf.mxu0
    %v2065 = vadd.f32 %v1851, %v2064
    %v2066 = vpop.f32.mrf.mxu0
    %2067 = vdwg.mxu0
    %v2068 = vmax.f32 %v2026, 0.0
    %v2069 = vmax.f32 %v2039, 0.0
    %v2070 = vmax.f32 %v2052, 0.0
    %v2071 = vmax.f32 %v2065, 0.0
    %v2072 = vpack.c.bf16 %v2068, %v2068
    %v2073 = vpack.c.bf16 %v2069, %v2069
    %v2074 = vpack.c.bf16 %v2070, %v2070
    %v2075 = vpack.c.bf16 %v2071, %v2071
    %v2076 = vld [vmem:[%s10] sm:$0xff]
    %v2077 = vld [vmem:[%s10 + $0x8] sm:$0xff]
    %v2078 = vld [vmem:[%s10 + $0x10] sm:$0xff]
    %v2079 = vld [vmem:[%s10 + $0x18] sm:$0xff]
    %v2080 = vld [vmem:[%s10 + $0x20] sm:$0xff]
    %v2081 = vld [vmem:[%s10 + $0x28] sm:$0xff]
    %v2082 = vld [vmem:[%s10 + $0x30] sm:$0xff]
    %v2083 = vld [vmem:[%s10 + $0x38] sm:$0xff]
    %v2084 = vld [vmem:[%s10 + $0x40] sm:$0xff]
    %v2085 = vld [vmem:[%s10 + $0x48] sm:$0xff]
    %v2086 = vld [vmem:[%s10 + $0x50] sm:$0xff]
    %v2087 = vld [vmem:[%s10 + $0x58] sm:$0xff]
    %v2088 = vld [vmem:[%s10 + $0x60] sm:$0xff]
    %v2089 = vld [vmem:[%s10 + $0x68] sm:$0xff]
    %v2090 = vld [vmem:[%s10 + $0x70] sm:$0xff]
    %v2091 = vld [vmem:[%s10 + $0x78] sm:$0xff]
    %v2092 = vld [vmem:[%s10 + $0x80] sm:$0xff]
    %v2093 = vld [vmem:[%s10 + $0x88] sm:$0xff]
    %v2094 = vld [vmem:[%s10 + $0x90] sm:$0xff]
    %v2095 = vld [vmem:[%s10 + $0x98] sm:$0xff]
    %v2096 = vld [vmem:[%s10 + $0xa0] sm:$0xff]
    %v2097 = vld [vmem:[%s10 + $0xa8] sm:$0xff]
    %v2098 = vld [vmem:[%s10 + $0xb0] sm:$0xff]
    %v2099 = vld [vmem:[%s10 + $0xb8] sm:$0xff]
    %v2100 = vld [vmem:[%s10 + $0xc0] sm:$0xff]
    %v2101 = vld [vmem:[%s10 + $0xc8] sm:$0xff]
    %v2102 = vld [vmem:[%s10 + $0xd0] sm:$0xff]
    %v2103 = vld [vmem:[%s10 + $0xd8] sm:$0xff]
    %v2104 = vld [vmem:[%s10 + $0xe0] sm:$0xff]
    %v2105 = vld [vmem:[%s10 + $0xe8] sm:$0xff]
    %v2106 = vld [vmem:[%s10 + $0xf0] sm:$0xff]
    %v2107 = vld [vmem:[%s10 + $0xf8] sm:$0xff]
    %v2108 = vld [vmem:[%s10 + $0x100] sm:$0xff]
    %v2109 = vld [vmem:[%s10 + $0x108] sm:$0xff]
    %v2110 = vld [vmem:[%s10 + $0x110] sm:$0xff]
    %v2111 = vld [vmem:[%s10 + $0x118] sm:$0xff]
    %v2112 = vld [vmem:[%s10 + $0x120] sm:$0xff]
    %v2113 = vld [vmem:[%s10 + $0x128] sm:$0xff]
    %v2114 = vld [vmem:[%s10 + $0x130] sm:$0xff]
    %v2115 = vld [vmem:[%s10 + $0x138] sm:$0xff]
    %v2116 = vld [vmem:[%s10 + $0x140] sm:$0xff]
    %v2117 = vld [vmem:[%s10 + $0x148] sm:$0xff]
    %v2118 = vld [vmem:[%s10 + $0x150] sm:$0xff]
    %v2119 = vld [vmem:[%s10 + $0x158] sm:$0xff]
    %v2120 = vld [vmem:[%s10 + $0x160] sm:$0xff]
    %v2121 = vld [vmem:[%s10 + $0x168] sm:$0xff]
    %v2122 = vld [vmem:[%s10 + $0x170] sm:$0xff]
    %v2123 = vld [vmem:[%s10 + $0x178] sm:$0xff]
    %v2124 = vld [vmem:[%s10 + $0x180] sm:$0xff]
    %v2125 = vld [vmem:[%s10 + $0x188] sm:$0xff]
    %v2126 = vld [vmem:[%s10 + $0x190] sm:$0xff]
    %v2127 = vld [vmem:[%s10 + $0x198] sm:$0xff]
    %v2128 = vld [vmem:[%s10 + $0x1a0] sm:$0xff]
    %v2129 = vld [vmem:[%s10 + $0x1a8] sm:$0xff]
    %v2130 = vld [vmem:[%s10 + $0x1b0] sm:$0xff]
    %v2131 = vld [vmem:[%s10 + $0x1b8] sm:$0xff]
    %v2132 = vld [vmem:[%s10 + $0x1c0] sm:$0xff]
    %v2133 = vld [vmem:[%s10 + $0x1c8] sm:$0xff]
    %v2134 = vld [vmem:[%s10 + $0x1d0] sm:$0xff]
    %v2135 = vld [vmem:[%s10 + $0x1d8] sm:$0xff]
    %v2136 = vld [vmem:[%s10 + $0x1e0] sm:$0xff]
    %v2137 = vld [vmem:[%s10 + $0x1e8] sm:$0xff]
    %v2138 = vld [vmem:[%s10 + $0x1f0] sm:$0xff]
    %v2139 = vld [vmem:[%s10 + $0x1f8] sm:$0xff]
    %v2140 = vld [vmem:[%s10 + $0x200] sm:$0xff]
    %v2141 = vld [vmem:[%s10 + $0x208] sm:$0xff]
    %v2142 = vld [vmem:[%s10 + $0x210] sm:$0xff]
    %v2143 = vld [vmem:[%s10 + $0x218] sm:$0xff]
    %v2144 = vld [vmem:[%s10 + $0x220] sm:$0xff]
    %v2145 = vld [vmem:[%s10 + $0x228] sm:$0xff]
    %v2146 = vld [vmem:[%s10 + $0x230] sm:$0xff]
    %v2147 = vld [vmem:[%s10 + $0x238] sm:$0xff]
    %v2148 = vld [vmem:[%s10 + $0x240] sm:$0xff]
    %v2149 = vld [vmem:[%s10 + $0x248] sm:$0xff]
    %v2150 = vld [vmem:[%s10 + $0x250] sm:$0xff]
    %v2151 = vld [vmem:[%s10 + $0x258] sm:$0xff]
    %v2152 = vld [vmem:[%s10 + $0x260] sm:$0xff]
    %v2153 = vld [vmem:[%s10 + $0x268] sm:$0xff]
    %v2154 = vld [vmem:[%s10 + $0x270] sm:$0xff]
    %v2155 = vld [vmem:[%s10 + $0x278] sm:$0xff]
    %v2156 = vld [vmem:[%s10 + $0x280] sm:$0xff]
    %v2157 = vld [vmem:[%s10 + $0x288] sm:$0xff]
    %v2158 = vld [vmem:[%s10 + $0x290] sm:$0xff]
    %v2159 = vld [vmem:[%s10 + $0x298] sm:$0xff]
    %v2160 = vld [vmem:[%s10 + $0x2a0] sm:$0xff]
    %v2161 = vld [vmem:[%s10 + $0x2a8] sm:$0xff]
    %v2162 = vld [vmem:[%s10 + $0x2b0] sm:$0xff]
    %v2163 = vld [vmem:[%s10 + $0x2b8] sm:$0xff]
    %v2164 = vld [vmem:[%s10 + $0x2c0] sm:$0xff]
    %v2165 = vld [vmem:[%s10 + $0x2c8] sm:$0xff]
    %v2166 = vld [vmem:[%s10 + $0x2d0] sm:$0xff]
    %v2167 = vld [vmem:[%s10 + $0x2d8] sm:$0xff]
    %v2168 = vld [vmem:[%s10 + $0x2e0] sm:$0xff]
    %v2169 = vld [vmem:[%s10 + $0x2e8] sm:$0xff]
    %v2170 = vld [vmem:[%s10 + $0x2f0] sm:$0xff]
    %v2171 = vld [vmem:[%s10 + $0x2f8] sm:$0xff]
    %v2172 = vld [vmem:[%s10 + $0x300] sm:$0xff]
    %v2173 = vld [vmem:[%s10 + $0x308] sm:$0xff]
    %v2174 = vld [vmem:[%s10 + $0x310] sm:$0xff]
    %v2175 = vld [vmem:[%s10 + $0x318] sm:$0xff]
    %v2176 = vld [vmem:[%s10 + $0x320] sm:$0xff]
    %v2177 = vld [vmem:[%s10 + $0x328] sm:$0xff]
    %v2178 = vld [vmem:[%s10 + $0x330] sm:$0xff]
    %v2179 = vld [vmem:[%s10 + $0x338] sm:$0xff]
    %v2180 = vld [vmem:[%s10 + $0x340] sm:$0xff]
    %v2181 = vld [vmem:[%s10 + $0x348] sm:$0xff]
    %v2182 = vld [vmem:[%s10 + $0x350] sm:$0xff]
    %v2183 = vld [vmem:[%s10 + $0x358] sm:$0xff]
    %v2184 = vld [vmem:[%s10 + $0x360] sm:$0xff]
    %v2185 = vld [vmem:[%s10 + $0x368] sm:$0xff]
    %v2186 = vld [vmem:[%s10 + $0x370] sm:$0xff]
    %v2187 = vld [vmem:[%s10 + $0x378] sm:$0xff]
    %v2188 = vld [vmem:[%s10 + $0x380] sm:$0xff]
    %v2189 = vld [vmem:[%s10 + $0x388] sm:$0xff]
    %v2190 = vld [vmem:[%s10 + $0x390] sm:$0xff]
    %v2191 = vld [vmem:[%s10 + $0x398] sm:$0xff]
    %v2192 = vld [vmem:[%s10 + $0x3a0] sm:$0xff]
    %v2193 = vld [vmem:[%s10 + $0x3a8] sm:$0xff]
    %v2194 = vld [vmem:[%s10 + $0x3b0] sm:$0xff]
    %v2195 = vld [vmem:[%s10 + $0x3b8] sm:$0xff]
    %v2196 = vld [vmem:[%s10 + $0x3c0] sm:$0xff]
    %v2197 = vld [vmem:[%s10 + $0x3c8] sm:$0xff]
    %v2198 = vld [vmem:[%s10 + $0x3d0] sm:$0xff]
    %v2199 = vld [vmem:[%s10 + $0x3d8] sm:$0xff]
    %v2200 = vld [vmem:[%s10 + $0x3e0] sm:$0xff]
    %v2201 = vld [vmem:[%s10 + $0x3e8] sm:$0xff]
    %v2202 = vld [vmem:[%s10 + $0x3f0] sm:$0xff]
    %v2203 = vld [vmem:[%s10 + $0x3f8] sm:$0xff]
    %v2204 = vld [vmem:[%s11] sm:$0xf]
    %v2206 = vperm.slane %v2204, 0
    %v2207 = vperm.slane %v2204, 1
    %v2208 = vperm.slane %v2204, 2
    %v2209 = vperm.slane %v2204, 3
    %v2342 = vunpack.c.l.b16 %v2076
    %v2343 = vunpack.c.h.b16 %v2076
    %v2344 = vunpack.c.l.b16 %v2077
    %v2345 = vunpack.c.h.b16 %v2077
    %v2346 = vunpack.c.l.b16 %v2078
    %v2347 = vunpack.c.h.b16 %v2078
    %v2348 = vunpack.c.l.b16 %v2079
    %v2349 = vunpack.c.h.b16 %v2079
    %v2350 = vunpack.c.l.b16 %v2080
    %v2351 = vunpack.c.h.b16 %v2080
    %v2352 = vunpack.c.l.b16 %v2081
    %v2353 = vunpack.c.h.b16 %v2081
    %v2354 = vunpack.c.l.b16 %v2082
    %v2355 = vunpack.c.h.b16 %v2082
    %v2356 = vunpack.c.l.b16 %v2083
    %v2357 = vunpack.c.h.b16 %v2083
    %v2358 = vunpack.c.l.b16 %v2084
    %v2359 = vunpack.c.h.b16 %v2084
    %v2360 = vunpack.c.l.b16 %v2085
    %v2361 = vunpack.c.h.b16 %v2085
    %v2362 = vunpack.c.l.b16 %v2086
    %v2363 = vunpack.c.h.b16 %v2086
    %v2364 = vunpack.c.l.b16 %v2087
    %v2365 = vunpack.c.h.b16 %v2087
    %v2366 = vunpack.c.l.b16 %v2088
    %v2367 = vunpack.c.h.b16 %v2088
    %v2368 = vunpack.c.l.b16 %v2089
    %v2369 = vunpack.c.h.b16 %v2089
    %v2370 = vunpack.c.l.b16 %v2090
    %v2371 = vunpack.c.h.b16 %v2090
    %v2372 = vunpack.c.l.b16 %v2091
    %v2373 = vunpack.c.h.b16 %v2091
    %v2374 = vunpack.c.l.b16 %v2092
    %v2375 = vunpack.c.h.b16 %v2092
    %v2376 = vunpack.c.l.b16 %v2093
    %v2377 = vunpack.c.h.b16 %v2093
    %v2378 = vunpack.c.l.b16 %v2094
    %v2379 = vunpack.c.h.b16 %v2094
    %v2380 = vunpack.c.l.b16 %v2095
    %v2381 = vunpack.c.h.b16 %v2095
    %v2382 = vunpack.c.l.b16 %v2096
    %v2383 = vunpack.c.h.b16 %v2096
    %v2384 = vunpack.c.l.b16 %v2097
    %v2385 = vunpack.c.h.b16 %v2097
    %v2386 = vunpack.c.l.b16 %v2098
    %v2387 = vunpack.c.h.b16 %v2098
    %v2388 = vunpack.c.l.b16 %v2099
    %v2389 = vunpack.c.h.b16 %v2099
    %v2390 = vunpack.c.l.b16 %v2100
    %v2391 = vunpack.c.h.b16 %v2100
    %v2392 = vunpack.c.l.b16 %v2101
    %v2393 = vunpack.c.h.b16 %v2101
    %v2394 = vunpack.c.l.b16 %v2102
    %v2395 = vunpack.c.h.b16 %v2102
    %v2396 = vunpack.c.l.b16 %v2103
    %v2397 = vunpack.c.h.b16 %v2103
    %v2398 = vunpack.c.l.b16 %v2104
    %v2399 = vunpack.c.h.b16 %v2104
    %v2400 = vunpack.c.l.b16 %v2105
    %v2401 = vunpack.c.h.b16 %v2105
    %v2402 = vunpack.c.l.b16 %v2106
    %v2403 = vunpack.c.h.b16 %v2106
    %v2404 = vunpack.c.l.b16 %v2107
    %v2405 = vunpack.c.h.b16 %v2107
    %v2406 = vunpack.c.l.b16 %v2108
    %v2407 = vunpack.c.h.b16 %v2108
    %v2408 = vunpack.c.l.b16 %v2109
    %v2409 = vunpack.c.h.b16 %v2109
    %v2410 = vunpack.c.l.b16 %v2110
    %v2411 = vunpack.c.h.b16 %v2110
    %v2412 = vunpack.c.l.b16 %v2111
    %v2413 = vunpack.c.h.b16 %v2111
    %v2414 = vunpack.c.l.b16 %v2112
    %v2415 = vunpack.c.h.b16 %v2112
    %v2416 = vunpack.c.l.b16 %v2113
    %v2417 = vunpack.c.h.b16 %v2113
    %v2418 = vunpack.c.l.b16 %v2114
    %v2419 = vunpack.c.h.b16 %v2114
    %v2420 = vunpack.c.l.b16 %v2115
    %v2421 = vunpack.c.h.b16 %v2115
    %v2422 = vunpack.c.l.b16 %v2116
    %v2423 = vunpack.c.h.b16 %v2116
    %v2424 = vunpack.c.l.b16 %v2117
    %v2425 = vunpack.c.h.b16 %v2117
    %v2426 = vunpack.c.l.b16 %v2118
    %v2427 = vunpack.c.h.b16 %v2118
    %v2428 = vunpack.c.l.b16 %v2119
    %v2429 = vunpack.c.h.b16 %v2119
    %v2430 = vunpack.c.l.b16 %v2120
    %v2431 = vunpack.c.h.b16 %v2120
    %v2432 = vunpack.c.l.b16 %v2121
    %v2433 = vunpack.c.h.b16 %v2121
    %v2434 = vunpack.c.l.b16 %v2122
    %v2435 = vunpack.c.h.b16 %v2122
    %v2436 = vunpack.c.l.b16 %v2123
    %v2437 = vunpack.c.h.b16 %v2123
    %v2438 = vunpack.c.l.b16 %v2124
    %v2439 = vunpack.c.h.b16 %v2124
    %v2440 = vunpack.c.l.b16 %v2125
    %v2441 = vunpack.c.h.b16 %v2125
    %v2442 = vunpack.c.l.b16 %v2126
    %v2443 = vunpack.c.h.b16 %v2126
    %v2444 = vunpack.c.l.b16 %v2127
    %v2445 = vunpack.c.h.b16 %v2127
    %v2446 = vunpack.c.l.b16 %v2128
    %v2447 = vunpack.c.h.b16 %v2128
    %v2448 = vunpack.c.l.b16 %v2129
    %v2449 = vunpack.c.h.b16 %v2129
    %v2450 = vunpack.c.l.b16 %v2130
    %v2451 = vunpack.c.h.b16 %v2130
    %v2452 = vunpack.c.l.b16 %v2131
    %v2453 = vunpack.c.h.b16 %v2131
    %v2454 = vunpack.c.l.b16 %v2132
    %v2455 = vunpack.c.h.b16 %v2132
    %v2456 = vunpack.c.l.b16 %v2133
    %v2457 = vunpack.c.h.b16 %v2133
    %v2458 = vunpack.c.l.b16 %v2134
    %v2459 = vunpack.c.h.b16 %v2134
    %v2460 = vunpack.c.l.b16 %v2135
    %v2461 = vunpack.c.h.b16 %v2135
    %v2462 = vunpack.c.l.b16 %v2136
    %v2463 = vunpack.c.h.b16 %v2136
    %v2464 = vunpack.c.l.b16 %v2137
    %v2465 = vunpack.c.h.b16 %v2137
    %v2466 = vunpack.c.l.b16 %v2138
    %v2467 = vunpack.c.h.b16 %v2138
    %v2468 = vunpack.c.l.b16 %v2139
    %v2469 = vunpack.c.h.b16 %v2139
    %v2470 = vunpack.c.l.b16 %v2140
    %v2471 = vunpack.c.h.b16 %v2140
    %v2472 = vunpack.c.l.b16 %v2141
    %v2473 = vunpack.c.h.b16 %v2141
    %v2474 = vunpack.c.l.b16 %v2142
    %v2475 = vunpack.c.h.b16 %v2142
    %v2476 = vunpack.c.l.b16 %v2143
    %v2477 = vunpack.c.h.b16 %v2143
    %v2478 = vunpack.c.l.b16 %v2144
    %v2479 = vunpack.c.h.b16 %v2144
    %v2480 = vunpack.c.l.b16 %v2145
    %v2481 = vunpack.c.h.b16 %v2145
    %v2482 = vunpack.c.l.b16 %v2146
    %v2483 = vunpack.c.h.b16 %v2146
    %v2484 = vunpack.c.l.b16 %v2147
    %v2485 = vunpack.c.h.b16 %v2147
    %v2486 = vunpack.c.l.b16 %v2148
    %v2487 = vunpack.c.h.b16 %v2148
    %v2488 = vunpack.c.l.b16 %v2149
    %v2489 = vunpack.c.h.b16 %v2149
    %v2490 = vunpack.c.l.b16 %v2150
    %v2491 = vunpack.c.h.b16 %v2150
    %v2492 = vunpack.c.l.b16 %v2151
    %v2493 = vunpack.c.h.b16 %v2151
    %v2494 = vunpack.c.l.b16 %v2152
    %v2495 = vunpack.c.h.b16 %v2152
    %v2496 = vunpack.c.l.b16 %v2153
    %v2497 = vunpack.c.h.b16 %v2153
    %v2498 = vunpack.c.l.b16 %v2154
    %v2499 = vunpack.c.h.b16 %v2154
    %v2500 = vunpack.c.l.b16 %v2155
    %v2501 = vunpack.c.h.b16 %v2155
    %v2502 = vunpack.c.l.b16 %v2156
    %v2503 = vunpack.c.h.b16 %v2156
    %v2504 = vunpack.c.l.b16 %v2157
    %v2505 = vunpack.c.h.b16 %v2157
    %v2506 = vunpack.c.l.b16 %v2158
    %v2507 = vunpack.c.h.b16 %v2158
    %v2508 = vunpack.c.l.b16 %v2159
    %v2509 = vunpack.c.h.b16 %v2159
    %v2510 = vunpack.c.l.b16 %v2160
    %v2511 = vunpack.c.h.b16 %v2160
    %v2512 = vunpack.c.l.b16 %v2161
    %v2513 = vunpack.c.h.b16 %v2161
    %v2514 = vunpack.c.l.b16 %v2162
    %v2515 = vunpack.c.h.b16 %v2162
    %v2516 = vunpack.c.l.b16 %v2163
    %v2517 = vunpack.c.h.b16 %v2163
    %v2518 = vunpack.c.l.b16 %v2164
    %v2519 = vunpack.c.h.b16 %v2164
    %v2520 = vunpack.c.l.b16 %v2165
    %v2521 = vunpack.c.h.b16 %v2165
    %v2522 = vunpack.c.l.b16 %v2166
    %v2523 = vunpack.c.h.b16 %v2166
    %v2524 = vunpack.c.l.b16 %v2167
    %v2525 = vunpack.c.h.b16 %v2167
    %v2526 = vunpack.c.l.b16 %v2168
    %v2527 = vunpack.c.h.b16 %v2168
    %v2528 = vunpack.c.l.b16 %v2169
    %v2529 = vunpack.c.h.b16 %v2169
    %v2530 = vunpack.c.l.b16 %v2170
    %v2531 = vunpack.c.h.b16 %v2170
    %v2532 = vunpack.c.l.b16 %v2171
    %v2533 = vunpack.c.h.b16 %v2171
    %v2534 = vunpack.c.l.b16 %v2172
    %v2535 = vunpack.c.h.b16 %v2172
    %v2536 = vunpack.c.l.b16 %v2173
    %v2537 = vunpack.c.h.b16 %v2173
    %v2538 = vunpack.c.l.b16 %v2174
    %v2539 = vunpack.c.h.b16 %v2174
    %v2540 = vunpack.c.l.b16 %v2175
    %v2541 = vunpack.c.h.b16 %v2175
    %v2542 = vunpack.c.l.b16 %v2176
    %v2543 = vunpack.c.h.b16 %v2176
    %v2544 = vunpack.c.l.b16 %v2177
    %v2545 = vunpack.c.h.b16 %v2177
    %v2546 = vunpack.c.l.b16 %v2178
    %v2547 = vunpack.c.h.b16 %v2178
    %v2548 = vunpack.c.l.b16 %v2179
    %v2549 = vunpack.c.h.b16 %v2179
    %v2550 = vunpack.c.l.b16 %v2180
    %v2551 = vunpack.c.h.b16 %v2180
    %v2552 = vunpack.c.l.b16 %v2181
    %v2553 = vunpack.c.h.b16 %v2181
    %v2554 = vunpack.c.l.b16 %v2182
    %v2555 = vunpack.c.h.b16 %v2182
    %v2556 = vunpack.c.l.b16 %v2183
    %v2557 = vunpack.c.h.b16 %v2183
    %v2558 = vunpack.c.l.b16 %v2184
    %v2559 = vunpack.c.h.b16 %v2184
    %v2560 = vunpack.c.l.b16 %v2185
    %v2561 = vunpack.c.h.b16 %v2185
    %v2562 = vunpack.c.l.b16 %v2186
    %v2563 = vunpack.c.h.b16 %v2186
    %v2564 = vunpack.c.l.b16 %v2187
    %v2565 = vunpack.c.h.b16 %v2187
    %v2566 = vunpack.c.l.b16 %v2188
    %v2567 = vunpack.c.h.b16 %v2188
    %v2568 = vunpack.c.l.b16 %v2189
    %v2569 = vunpack.c.h.b16 %v2189
    %v2570 = vunpack.c.l.b16 %v2190
    %v2571 = vunpack.c.h.b16 %v2190
    %v2572 = vunpack.c.l.b16 %v2191
    %v2573 = vunpack.c.h.b16 %v2191
    %v2574 = vunpack.c.l.b16 %v2192
    %v2575 = vunpack.c.h.b16 %v2192
    %v2576 = vunpack.c.l.b16 %v2193
    %v2577 = vunpack.c.h.b16 %v2193
    %v2578 = vunpack.c.l.b16 %v2194
    %v2579 = vunpack.c.h.b16 %v2194
    %v2580 = vunpack.c.l.b16 %v2195
    %v2581 = vunpack.c.h.b16 %v2195
    %v2582 = vunpack.c.l.b16 %v2196
    %v2583 = vunpack.c.h.b16 %v2196
    %v2584 = vunpack.c.l.b16 %v2197
    %v2585 = vunpack.c.h.b16 %v2197
    %v2586 = vunpack.c.l.b16 %v2198
    %v2587 = vunpack.c.h.b16 %v2198
    %v2588 = vunpack.c.l.b16 %v2199
    %v2589 = vunpack.c.h.b16 %v2199
    %v2590 = vunpack.c.l.b16 %v2200
    %v2591 = vunpack.c.h.b16 %v2200
    %v2592 = vunpack.c.l.b16 %v2201
    %v2593 = vunpack.c.h.b16 %v2201
    %v2594 = vunpack.c.l.b16 %v2202
    %v2595 = vunpack.c.h.b16 %v2202
    %v2596 = vunpack.c.l.b16 %v2203
    %v2597 = vunpack.c.h.b16 %v2203
    %v2598 = vpack.c.b16 %v2346, %v2342
    %v2599 = vpack.c.b16 %v2347, %v2343
    %v2600 = vpack.c.b16 %v2348, %v2344
    %v2601 = vpack.c.b16 %v2349, %v2345
    %v2602 = vpack.c.b16 %v2354, %v2350
    %v2603 = vpack.c.b16 %v2355, %v2351
    %v2604 = vpack.c.b16 %v2356, %v2352
    %v2605 = vpack.c.b16 %v2357, %v2353
    %v2606 = vpack.c.b16 %v2362, %v2358
    %v2607 = vpack.c.b16 %v2363, %v2359
    %v2608 = vpack.c.b16 %v2364, %v2360
    %v2609 = vpack.c.b16 %v2365, %v2361
    %v2610 = vpack.c.b16 %v2370, %v2366
    %v2611 = vpack.c.b16 %v2371, %v2367
    %v2612 = vpack.c.b16 %v2372, %v2368
    %v2613 = vpack.c.b16 %v2373, %v2369
    %v2614 = vpack.c.b16 %v2378, %v2374
    %v2615 = vpack.c.b16 %v2379, %v2375
    %v2616 = vpack.c.b16 %v2380, %v2376
    %v2617 = vpack.c.b16 %v2381, %v2377
    %v2618 = vpack.c.b16 %v2386, %v2382
    %v2619 = vpack.c.b16 %v2387, %v2383
    %v2620 = vpack.c.b16 %v2388, %v2384
    %v2621 = vpack.c.b16 %v2389, %v2385
    %v2622 = vpack.c.b16 %v2394, %v2390
    %v2623 = vpack.c.b16 %v2395, %v2391
    %v2624 = vpack.c.b16 %v2396, %v2392
    %v2625 = vpack.c.b16 %v2397, %v2393
    %v2626 = vpack.c.b16 %v2402, %v2398
    %v2627 = vpack.c.b16 %v2403, %v2399
    %v2628 = vpack.c.b16 %v2404, %v2400
    %v2629 = vpack.c.b16 %v2405, %v2401
    %v2630 = vpack.c.b16 %v2410, %v2406
    %v2631 = vpack.c.b16 %v2411, %v2407
    %v2632 = vpack.c.b16 %v2412, %v2408
    %v2633 = vpack.c.b16 %v2413, %v2409
    %v2634 = vpack.c.b16 %v2418, %v2414
    %v2635 = vpack.c.b16 %v2419, %v2415
    %v2636 = vpack.c.b16 %v2420, %v2416
    %v2637 = vpack.c.b16 %v2421, %v2417
    %v2638 = vpack.c.b16 %v2426, %v2422
    %v2639 = vpack.c.b16 %v2427, %v2423
    %v2640 = vpack.c.b16 %v2428, %v2424
    %v2641 = vpack.c.b16 %v2429, %v2425
    %v2642 = vpack.c.b16 %v2434, %v2430
    %v2643 = vpack.c.b16 %v2435, %v2431
    %v2644 = vpack.c.b16 %v2436, %v2432
    %v2645 = vpack.c.b16 %v2437, %v2433
    %v2646 = vpack.c.b16 %v2442, %v2438
    %v2647 = vpack.c.b16 %v2443, %v2439
    %v2648 = vpack.c.b16 %v2444, %v2440
    %v2649 = vpack.c.b16 %v2445, %v2441
    %v2650 = vpack.c.b16 %v2450, %v2446
    %v2651 = vpack.c.b16 %v2451, %v2447
    %v2652 = vpack.c.b16 %v2452, %v2448
    %v2653 = vpack.c.b16 %v2453, %v2449
    %v2654 = vpack.c.b16 %v2458, %v2454
    %v2655 = vpack.c.b16 %v2459, %v2455
    %v2656 = vpack.c.b16 %v2460, %v2456
    %v2657 = vpack.c.b16 %v2461, %v2457
    %v2658 = vpack.c.b16 %v2466, %v2462
    %v2659 = vpack.c.b16 %v2467, %v2463
    %v2660 = vpack.c.b16 %v2468, %v2464
    %v2661 = vpack.c.b16 %v2469, %v2465
    %v2662 = vpack.c.b16 %v2474, %v2470
    %v2663 = vpack.c.b16 %v2475, %v2471
    %v2664 = vpack.c.b16 %v2476, %v2472
    %v2665 = vpack.c.b16 %v2477, %v2473
    %v2666 = vpack.c.b16 %v2482, %v2478
    %v2667 = vpack.c.b16 %v2483, %v2479
    %v2668 = vpack.c.b16 %v2484, %v2480
    %v2669 = vpack.c.b16 %v2485, %v2481
    %v2670 = vpack.c.b16 %v2490, %v2486
    %v2671 = vpack.c.b16 %v2491, %v2487
    %v2672 = vpack.c.b16 %v2492, %v2488
    %v2673 = vpack.c.b16 %v2493, %v2489
    %v2674 = vpack.c.b16 %v2498, %v2494
    %v2675 = vpack.c.b16 %v2499, %v2495
    %v2676 = vpack.c.b16 %v2500, %v2496
    %v2677 = vpack.c.b16 %v2501, %v2497
    %v2678 = vpack.c.b16 %v2506, %v2502
    %v2679 = vpack.c.b16 %v2507, %v2503
    %v2680 = vpack.c.b16 %v2508, %v2504
    %v2681 = vpack.c.b16 %v2509, %v2505
    %v2682 = vpack.c.b16 %v2514, %v2510
    %v2683 = vpack.c.b16 %v2515, %v2511
    %v2684 = vpack.c.b16 %v2516, %v2512
    %v2685 = vpack.c.b16 %v2517, %v2513
    %v2686 = vpack.c.b16 %v2522, %v2518
    %v2687 = vpack.c.b16 %v2523, %v2519
    %v2688 = vpack.c.b16 %v2524, %v2520
    %v2689 = vpack.c.b16 %v2525, %v2521
    %v2690 = vpack.c.b16 %v2530, %v2526
    %v2691 = vpack.c.b16 %v2531, %v2527
    %v2692 = vpack.c.b16 %v2532, %v2528
    %v2693 = vpack.c.b16 %v2533, %v2529
    %v2694 = vpack.c.b16 %v2538, %v2534
    %v2695 = vpack.c.b16 %v2539, %v2535
    %v2696 = vpack.c.b16 %v2540, %v2536
    %v2697 = vpack.c.b16 %v2541, %v2537
    %v2698 = vpack.c.b16 %v2546, %v2542
    %v2699 = vpack.c.b16 %v2547, %v2543
    %v2700 = vpack.c.b16 %v2548, %v2544
    %v2701 = vpack.c.b16 %v2549, %v2545
    %v2702 = vpack.c.b16 %v2554, %v2550
    %v2703 = vpack.c.b16 %v2555, %v2551
    %v2704 = vpack.c.b16 %v2556, %v2552
    %v2705 = vpack.c.b16 %v2557, %v2553
    %v2706 = vpack.c.b16 %v2562, %v2558
    %v2707 = vpack.c.b16 %v2563, %v2559
    %v2708 = vpack.c.b16 %v2564, %v2560
    %v2709 = vpack.c.b16 %v2565, %v2561
    %v2710 = vpack.c.b16 %v2570, %v2566
    %v2711 = vpack.c.b16 %v2571, %v2567
    %v2712 = vpack.c.b16 %v2572, %v2568
    %v2713 = vpack.c.b16 %v2573, %v2569
    %v2714 = vpack.c.b16 %v2578, %v2574
    %v2715 = vpack.c.b16 %v2579, %v2575
    %v2716 = vpack.c.b16 %v2580, %v2576
    %v2717 = vpack.c.b16 %v2581, %v2577
    %v2718 = vpack.c.b16 %v2586, %v2582
    %v2719 = vpack.c.b16 %v2587, %v2583
    %v2720 = vpack.c.b16 %v2588, %v2584
    %v2721 = vpack.c.b16 %v2589, %v2585
    %v2722 = vpack.c.b16 %v2594, %v2590
    %v2723 = vpack.c.b16 %v2595, %v2591
    %v2724 = vpack.c.b16 %v2596, %v2592
    %v2725 = vpack.c.b16 %v2597, %v2593
    %2854 = vmatpush.bf16.msra.mxu0 %v2626
    %2855 = vmatpush.bf16.msra.mxu0 %v2622
    %2856 = vmatpush.bf16.msra.mxu0 %v2618
    %2857 = vmatpush.bf16.msra.mxu0 %v2614
    %2858 = vmatpush.bf16.msra.mxu0 %v2610
    %2859 = vmatpush.bf16.msra.mxu0 %v2606
    %2860 = vmatpush.bf16.msra.mxu0 %v2602
    %2861 = vmatpush.bf16.msra.mxu0 %v2598
    %2862 = vmatmul.bf16.gmra.mxu0 %v2072
    %v2863 = vpop.f32.mrf.mxu0
    %v2864 = vadd.f32 %v2206, %v2863
    %v2865 = vpop.f32.mrf.mxu0
    %2866 = vdwg.mxu0
    %2867 = vmatpush.bf16.msra.mxu0 %v2658
    %2868 = vmatpush.bf16.msra.mxu0 %v2654
    %2869 = vmatpush.bf16.msra.mxu0 %v2650
    %2870 = vmatpush.bf16.msra.mxu0 %v2646
    %2871 = vmatpush.bf16.msra.mxu0 %v2642
    %2872 = vmatpush.bf16.msra.mxu0 %v2638
    %2873 = vmatpush.bf16.msra.mxu0 %v2634
    %2874 = vmatpush.bf16.msra.mxu0 %v2630
    %2875 = vmatmul.bf16.gmra.mxu0 %v2073
    %v2876 = vpop.f32.mrf.mxu0
    %v2877 = vadd.f32 %v2864, %v2876
    %v2878 = vpop.f32.mrf.mxu0
    %2879 = vdwg.mxu0
    %2880 = vmatpush.bf16.msra.mxu0 %v2690
    %2881 = vmatpush.bf16.msra.mxu0 %v2686
    %2882 = vmatpush.bf16.msra.mxu0 %v2682
    %2883 = vmatpush.bf16.msra.mxu0 %v2678
    %2884 = vmatpush.bf16.msra.mxu0 %v2674
    %2885 = vmatpush.bf16.msra.mxu0 %v2670
    %2886 = vmatpush.bf16.msra.mxu0 %v2666
    %2887 = vmatpush.bf16.msra.mxu0 %v2662
    %2888 = vmatmul.bf16.gmra.mxu0 %v2074
    %v2889 = vpop.f32.mrf.mxu0
    %v2890 = vadd.f32 %v2877, %v2889
    %v2891 = vpop.f32.mrf.mxu0
    %2892 = vdwg.mxu0
    %2893 = vmatpush.bf16.msra.mxu0 %v2722
    %2894 = vmatpush.bf16.msra.mxu0 %v2718
    %2895 = vmatpush.bf16.msra.mxu0 %v2714
    %2896 = vmatpush.bf16.msra.mxu0 %v2710
    %2897 = vmatpush.bf16.msra.mxu0 %v2706
    %2898 = vmatpush.bf16.msra.mxu0 %v2702
    %2899 = vmatpush.bf16.msra.mxu0 %v2698
    %2900 = vmatpush.bf16.msra.mxu0 %v2694
    %2901 = vmatmul.bf16.gmra.mxu0 %v2075
    %v2902 = vpop.f32.mrf.mxu0
    %v2903 = vadd.f32 %v2890, %v2902
    %v2904 = vpop.f32.mrf.mxu0
    %2905 = vdwg.mxu0
    %2906 = vmatpush.bf16.msra.mxu0 %v2627
    %2907 = vmatpush.bf16.msra.mxu0 %v2623
    %2908 = vmatpush.bf16.msra.mxu0 %v2619
    %2909 = vmatpush.bf16.msra.mxu0 %v2615
    %2910 = vmatpush.bf16.msra.mxu0 %v2611
    %2911 = vmatpush.bf16.msra.mxu0 %v2607
    %2912 = vmatpush.bf16.msra.mxu0 %v2603
    %2913 = vmatpush.bf16.msra.mxu0 %v2599
    %2914 = vmatmul.bf16.gmra.mxu0 %v2072
    %v2915 = vpop.f32.mrf.mxu0
    %v2916 = vadd.f32 %v2207, %v2915
    %v2917 = vpop.f32.mrf.mxu0
    %2918 = vdwg.mxu0
    %2919 = vmatpush.bf16.msra.mxu0 %v2659
    %2920 = vmatpush.bf16.msra.mxu0 %v2655
    %2921 = vmatpush.bf16.msra.mxu0 %v2651
    %2922 = vmatpush.bf16.msra.mxu0 %v2647
    %2923 = vmatpush.bf16.msra.mxu0 %v2643
    %2924 = vmatpush.bf16.msra.mxu0 %v2639
    %2925 = vmatpush.bf16.msra.mxu0 %v2635
    %2926 = vmatpush.bf16.msra.mxu0 %v2631
    %2927 = vmatmul.bf16.gmra.mxu0 %v2073
    %v2928 = vpop.f32.mrf.mxu0
    %v2929 = vadd.f32 %v2916, %v2928
    %v2930 = vpop.f32.mrf.mxu0
    %2931 = vdwg.mxu0
    %2932 = vmatpush.bf16.msra.mxu0 %v2691
    %2933 = vmatpush.bf16.msra.mxu0 %v2687
    %2934 = vmatpush.bf16.msra.mxu0 %v2683
    %2935 = vmatpush.bf16.msra.mxu0 %v2679
    %2936 = vmatpush.bf16.msra.mxu0 %v2675
    %2937 = vmatpush.bf16.msra.mxu0 %v2671
    %2938 = vmatpush.bf16.msra.mxu0 %v2667
    %2939 = vmatpush.bf16.msra.mxu0 %v2663
    %2940 = vmatmul.bf16.gmra.mxu0 %v2074
    %v2941 = vpop.f32.mrf.mxu0
    %v2942 = vadd.f32 %v2929, %v2941
    %v2943 = vpop.f32.mrf.mxu0
    %2944 = vdwg.mxu0
    %2945 = vmatpush.bf16.msra.mxu0 %v2723
    %2946 = vmatpush.bf16.msra.mxu0 %v2719
    %2947 = vmatpush.bf16.msra.mxu0 %v2715
    %2948 = vmatpush.bf16.msra.mxu0 %v2711
    %2949 = vmatpush.bf16.msra.mxu0 %v2707
    %2950 = vmatpush.bf16.msra.mxu0 %v2703
    %2951 = vmatpush.bf16.msra.mxu0 %v2699
    %2952 = vmatpush.bf16.msra.mxu0 %v2695
    %2953 = vmatmul.bf16.gmra.mxu0 %v2075
    %v2954 = vpop.f32.mrf.mxu0
    %v2955 = vadd.f32 %v2942, %v2954
    %v2956 = vpop.f32.mrf.mxu0
    %2957 = vdwg.mxu0
    %2958 = vmatpush.bf16.msra.mxu0 %v2628
    %2959 = vmatpush.bf16.msra.mxu0 %v2624
    %2960 = vmatpush.bf16.msra.mxu0 %v2620
    %2961 = vmatpush.bf16.msra.mxu0 %v2616
    %2962 = vmatpush.bf16.msra.mxu0 %v2612
    %2963 = vmatpush.bf16.msra.mxu0 %v2608
    %2964 = vmatpush.bf16.msra.mxu0 %v2604
    %2965 = vmatpush.bf16.msra.mxu0 %v2600
    %2966 = vmatmul.bf16.gmra.mxu0 %v2072
    %v2967 = vpop.f32.mrf.mxu0
    %v2968 = vadd.f32 %v2208, %v2967
    %v2969 = vpop.f32.mrf.mxu0
    %2970 = vdwg.mxu0
    %2971 = vmatpush.bf16.msra.mxu0 %v2660
    %2972 = vmatpush.bf16.msra.mxu0 %v2656
    %2973 = vmatpush.bf16.msra.mxu0 %v2652
    %2974 = vmatpush.bf16.msra.mxu0 %v2648
    %2975 = vmatpush.bf16.msra.mxu0 %v2644
    %2976 = vmatpush.bf16.msra.mxu0 %v2640
    %2977 = vmatpush.bf16.msra.mxu0 %v2636
    %2978 = vmatpush.bf16.msra.mxu0 %v2632
    %2979 = vmatmul.bf16.gmra.mxu0 %v2073
    %v2980 = vpop.f32.mrf.mxu0
    %v2981 = vadd.f32 %v2968, %v2980
    %v2982 = vpop.f32.mrf.mxu0
    %2983 = vdwg.mxu0
    %2984 = vmatpush.bf16.msra.mxu0 %v2692
    %2985 = vmatpush.bf16.msra.mxu0 %v2688
    %2986 = vmatpush.bf16.msra.mxu0 %v2684
    %2987 = vmatpush.bf16.msra.mxu0 %v2680
    %2988 = vmatpush.bf16.msra.mxu0 %v2676
    %2989 = vmatpush.bf16.msra.mxu0 %v2672
    %2990 = vmatpush.bf16.msra.mxu0 %v2668
    %2991 = vmatpush.bf16.msra.mxu0 %v2664
    %2992 = vmatmul.bf16.gmra.mxu0 %v2074
    %v2993 = vpop.f32.mrf.mxu0
    %v2994 = vadd.f32 %v2981, %v2993
    %v2995 = vpop.f32.mrf.mxu0
    %2996 = vdwg.mxu0
    %2997 = vmatpush.bf16.msra.mxu0 %v2724
    %2998 = vmatpush.bf16.msra.mxu0 %v2720
    %2999 = vmatpush.bf16.msra.mxu0 %v2716
    %3000 = vmatpush.bf16.msra.mxu0 %v2712
    %3001 = vmatpush.bf16.msra.mxu0 %v2708
    %3002 = vmatpush.bf16.msra.mxu0 %v2704
    %3003 = vmatpush.bf16.msra.mxu0 %v2700
    %3004 = vmatpush.bf16.msra.mxu0 %v2696
    %3005 = vmatmul.bf16.gmra.mxu0 %v2075
    %v3006 = vpop.f32.mrf.mxu0
    %v3007 = vadd.f32 %v2994, %v3006
    %v3008 = vpop.f32.mrf.mxu0
    %3009 = vdwg.mxu0
    %3010 = vmatpush.bf16.msra.mxu0 %v2629
    %3011 = vmatpush.bf16.msra.mxu0 %v2625
    %3012 = vmatpush.bf16.msra.mxu0 %v2621
    %3013 = vmatpush.bf16.msra.mxu0 %v2617
    %3014 = vmatpush.bf16.msra.mxu0 %v2613
    %3015 = vmatpush.bf16.msra.mxu0 %v2609
    %3016 = vmatpush.bf16.msra.mxu0 %v2605
    %3017 = vmatpush.bf16.msra.mxu0 %v2601
    %3018 = vmatmul.bf16.gmra.mxu0 %v2072
    %v3019 = vpop.f32.mrf.mxu0
    %v3020 = vadd.f32 %v2209, %v3019
    %v3021 = vpop.f32.mrf.mxu0
    %3022 = vdwg.mxu0
    %3023 = vmatpush.bf16.msra.mxu0 %v2661
    %3024 = vmatpush.bf16.msra.mxu0 %v2657
    %3025 = vmatpush.bf16.msra.mxu0 %v2653
    %3026 = vmatpush.bf16.msra.mxu0 %v2649
    %3027 = vmatpush.bf16.msra.mxu0 %v2645
    %3028 = vmatpush.bf16.msra.mxu0 %v2641
    %3029 = vmatpush.bf16.msra.mxu0 %v2637
    %3030 = vmatpush.bf16.msra.mxu0 %v2633
    %3031 = vmatmul.bf16.gmra.mxu0 %v2073
    %v3032 = vpop.f32.mrf.mxu0
    %v3033 = vadd.f32 %v3020, %v3032
    %v3034 = vpop.f32.mrf.mxu0
    %3035 = vdwg.mxu0
    %3036 = vmatpush.bf16.msra.mxu0 %v2693
    %3037 = vmatpush.bf16.msra.mxu0 %v2689
    %3038 = vmatpush.bf16.msra.mxu0 %v2685
    %3039 = vmatpush.bf16.msra.mxu0 %v2681
    %3040 = vmatpush.bf16.msra.mxu0 %v2677
    %3041 = vmatpush.bf16.msra.mxu0 %v2673
    %3042 = vmatpush.bf16.msra.mxu0 %v2669
    %3043 = vmatpush.bf16.msra.mxu0 %v2665
    %3044 = vmatmul.bf16.gmra.mxu0 %v2074
    %v3045 = vpop.f32.mrf.mxu0
    %v3046 = vadd.f32 %v3033, %v3045
    %v3047 = vpop.f32.mrf.mxu0
    %3048 = vdwg.mxu0
    %3049 = vmatpush.bf16.msra.mxu0 %v2725
    %3050 = vmatpush.bf16.msra.mxu0 %v2721
    %3051 = vmatpush.bf16.msra.mxu0 %v2717
    %3052 = vmatpush.bf16.msra.mxu0 %v2713
    %3053 = vmatpush.bf16.msra.mxu0 %v2709
    %3054 = vmatpush.bf16.msra.mxu0 %v2705
    %3055 = vmatpush.bf16.msra.mxu0 %v2701
    %3056 = vmatpush.bf16.msra.mxu0 %v2697
    %3057 = vmatmul.bf16.gmra.mxu0 %v2075
    %v3058 = vpop.f32.mrf.mxu0
    %v3059 = vadd.f32 %v3046, %v3058
    %v3060 = vpop.f32.mrf.mxu0
    %3061 = vdwg.mxu0
    %v3062 = vpack.c.bf16 %v2903, %v2903
    %v3063 = vpack.c.bf16 %v2955, %v2955
    %v3064 = vpack.c.bf16 %v3007, %v3007
    %v3065 = vpack.c.bf16 %v3059, %v3059
    %v3066 = vld [vmem:[%s12] sm:$0xf]
    %v3067 = vld [vmem:[%s12 + $0x4] sm:$0xf]
    %v3068 = vld [vmem:[%s12 + $0x8] sm:$0xf]
    %v3069 = vld [vmem:[%s12 + $0xc] sm:$0xf]
    %v3070 = vld [vmem:[%s12 + $0x10] sm:$0xf]
    %v3071 = vld [vmem:[%s12 + $0x14] sm:$0xf]
    %v3072 = vld [vmem:[%s12 + $0x18] sm:$0xf]
    %v3073 = vld [vmem:[%s12 + $0x1c] sm:$0xf]
    %v3074 = vld [vmem:[%s12 + $0x20] sm:$0xf]
    %v3075 = vld [vmem:[%s12 + $0x24] sm:$0xf]
    %v3076 = vld [vmem:[%s12 + $0x28] sm:$0xf]
    %v3077 = vld [vmem:[%s12 + $0x2c] sm:$0xf]
    %v3078 = vld [vmem:[%s12 + $0x30] sm:$0xf]
    %v3079 = vld [vmem:[%s12 + $0x34] sm:$0xf]
    %v3080 = vld [vmem:[%s12 + $0x38] sm:$0xf]
    %v3081 = vld [vmem:[%s12 + $0x3c] sm:$0xf]
    %v3082 = vld [vmem:[%s12 + $0x40] sm:$0xf]
    %v3083 = vld [vmem:[%s12 + $0x44] sm:$0xf]
    %v3084 = vld [vmem:[%s12 + $0x48] sm:$0xf]
    %v3085 = vld [vmem:[%s12 + $0x4c] sm:$0xf]
    %v3086 = vld [vmem:[%s12 + $0x50] sm:$0xf]
    %v3087 = vld [vmem:[%s12 + $0x54] sm:$0xf]
    %v3088 = vld [vmem:[%s12 + $0x58] sm:$0xf]
    %v3089 = vld [vmem:[%s12 + $0x5c] sm:$0xf]
    %v3090 = vld [vmem:[%s12 + $0x60] sm:$0xf]
    %v3091 = vld [vmem:[%s12 + $0x64] sm:$0xf]
    %v3092 = vld [vmem:[%s12 + $0x68] sm:$0xf]
    %v3093 = vld [vmem:[%s12 + $0x6c] sm:$0xf]
    %v3094 = vld [vmem:[%s12 + $0x70] sm:$0xf]
    %v3095 = vld [vmem:[%s12 + $0x74] sm:$0xf]
    %v3096 = vld [vmem:[%s12 + $0x78] sm:$0xf]
    %v3097 = vld [vmem:[%s12 + $0x7c] sm:$0xf]
    %v3098 = vld [vmem:[%s12 + $0x80] sm:$0xf]
    %v3099 = vld [vmem:[%s12 + $0x84] sm:$0xf]
    %v3100 = vld [vmem:[%s12 + $0x88] sm:$0xf]
    %v3101 = vld [vmem:[%s12 + $0x8c] sm:$0xf]
    %v3102 = vld [vmem:[%s12 + $0x90] sm:$0xf]
    %v3103 = vld [vmem:[%s12 + $0x94] sm:$0xf]
    %v3104 = vld [vmem:[%s12 + $0x98] sm:$0xf]
    %v3105 = vld [vmem:[%s12 + $0x9c] sm:$0xf]
    %v3106 = vld [vmem:[%s12 + $0xa0] sm:$0xf]
    %v3107 = vld [vmem:[%s12 + $0xa4] sm:$0xf]
    %v3108 = vld [vmem:[%s12 + $0xa8] sm:$0xf]
    %v3109 = vld [vmem:[%s12 + $0xac] sm:$0xf]
    %v3110 = vld [vmem:[%s12 + $0xb0] sm:$0xf]
    %v3111 = vld [vmem:[%s12 + $0xb4] sm:$0xf]
    %v3112 = vld [vmem:[%s12 + $0xb8] sm:$0xf]
    %v3113 = vld [vmem:[%s12 + $0xbc] sm:$0xf]
    %v3114 = vld [vmem:[%s12 + $0xc0] sm:$0xf]
    %v3115 = vld [vmem:[%s12 + $0xc4] sm:$0xf]
    %v3116 = vld [vmem:[%s12 + $0xc8] sm:$0xf]
    %v3117 = vld [vmem:[%s12 + $0xcc] sm:$0xf]
    %v3118 = vld [vmem:[%s12 + $0xd0] sm:$0xf]
    %v3119 = vld [vmem:[%s12 + $0xd4] sm:$0xf]
    %v3120 = vld [vmem:[%s12 + $0xd8] sm:$0xf]
    %v3121 = vld [vmem:[%s12 + $0xdc] sm:$0xf]
    %v3122 = vld [vmem:[%s12 + $0xe0] sm:$0xf]
    %v3123 = vld [vmem:[%s12 + $0xe4] sm:$0xf]
    %v3124 = vld [vmem:[%s12 + $0xe8] sm:$0xf]
    %v3125 = vld [vmem:[%s12 + $0xec] sm:$0xf]
    %v3126 = vld [vmem:[%s12 + $0xf0] sm:$0xf]
    %v3127 = vld [vmem:[%s12 + $0xf4] sm:$0xf]
    %v3128 = vld [vmem:[%s12 + $0xf8] sm:$0xf]
    %v3129 = vld [vmem:[%s12 + $0xfc] sm:$0xf]
    %v3130 = vld [vmem:[%s13] sm:$0x1]
    %v3132 = vperm.slane %v3130, 0
    %v3198 = vunpack.c.l.b16 %v3066
    %v3199 = vunpack.c.l.b16 %v3067
    %v3200 = vunpack.c.l.b16 %v3068
    %v3201 = vunpack.c.l.b16 %v3069
    %v3202 = vunpack.c.l.b16 %v3070
    %v3203 = vunpack.c.l.b16 %v3071
    %v3204 = vunpack.c.l.b16 %v3072
    %v3205 = vunpack.c.l.b16 %v3073
    %v3206 = vunpack.c.l.b16 %v3074
    %v3207 = vunpack.c.l.b16 %v3075
    %v3208 = vunpack.c.l.b16 %v3076
    %v3209 = vunpack.c.l.b16 %v3077
    %v3210 = vunpack.c.l.b16 %v3078
    %v3211 = vunpack.c.l.b16 %v3079
    %v3212 = vunpack.c.l.b16 %v3080
    %v3213 = vunpack.c.l.b16 %v3081
    %v3214 = vunpack.c.l.b16 %v3082
    %v3215 = vunpack.c.l.b16 %v3083
    %v3216 = vunpack.c.l.b16 %v3084
    %v3217 = vunpack.c.l.b16 %v3085
    %v3218 = vunpack.c.l.b16 %v3086
    %v3219 = vunpack.c.l.b16 %v3087
    %v3220 = vunpack.c.l.b16 %v3088
    %v3221 = vunpack.c.l.b16 %v3089
    %v3222 = vunpack.c.l.b16 %v3090
    %v3223 = vunpack.c.l.b16 %v3091
    %v3224 = vunpack.c.l.b16 %v3092
    %v3225 = vunpack.c.l.b16 %v3093
    %v3226 = vunpack.c.l.b16 %v3094
    %v3227 = vunpack.c.l.b16 %v3095
    %v3228 = vunpack.c.l.b16 %v3096
    %v3229 = vunpack.c.l.b16 %v3097
    %v3230 = vunpack.c.l.b16 %v3098
    %v3231 = vunpack.c.l.b16 %v3099
    %v3232 = vunpack.c.l.b16 %v3100
    %v3233 = vunpack.c.l.b16 %v3101
    %v3234 = vunpack.c.l.b16 %v3102
    %v3235 = vunpack.c.l.b16 %v3103
    %v3236 = vunpack.c.l.b16 %v3104
    %v3237 = vunpack.c.l.b16 %v3105
    %v3238 = vunpack.c.l.b16 %v3106
    %v3239 = vunpack.c.l.b16 %v3107
    %v3240 = vunpack.c.l.b16 %v3108
    %v3241 = vunpack.c.l.b16 %v3109
    %v3242 = vunpack.c.l.b16 %v3110
    %v3243 = vunpack.c.l.b16 %v3111
    %v3244 = vunpack.c.l.b16 %v3112
    %v3245 = vunpack.c.l.b16 %v3113
    %v3246 = vunpack.c.l.b16 %v3114
    %v3247 = vunpack.c.l.b16 %v3115
    %v3248 = vunpack.c.l.b16 %v3116
    %v3249 = vunpack.c.l.b16 %v3117
    %v3250 = vunpack.c.l.b16 %v3118
    %v3251 = vunpack.c.l.b16 %v3119
    %v3252 = vunpack.c.l.b16 %v3120
    %v3253 = vunpack.c.l.b16 %v3121
    %v3254 = vunpack.c.l.b16 %v3122
    %v3255 = vunpack.c.l.b16 %v3123
    %v3256 = vunpack.c.l.b16 %v3124
    %v3257 = vunpack.c.l.b16 %v3125
    %v3258 = vunpack.c.l.b16 %v3126
    %v3259 = vunpack.c.l.b16 %v3127
    %v3260 = vunpack.c.l.b16 %v3128
    %v3261 = vunpack.c.l.b16 %v3129
    %v3262 = vpack.c.b16 %v3199, %v3198
    %v3263 = vpack.c.b16 %v3201, %v3200
    %v3264 = vpack.c.b16 %v3203, %v3202
    %v3265 = vpack.c.b16 %v3205, %v3204
    %v3266 = vpack.c.b16 %v3207, %v3206
    %v3267 = vpack.c.b16 %v3209, %v3208
    %v3268 = vpack.c.b16 %v3211, %v3210
    %v3269 = vpack.c.b16 %v3213, %v3212
    %v3270 = vpack.c.b16 %v3215, %v3214
    %v3271 = vpack.c.b16 %v3217, %v3216
    %v3272 = vpack.c.b16 %v3219, %v3218
    %v3273 = vpack.c.b16 %v3221, %v3220
    %v3274 = vpack.c.b16 %v3223, %v3222
    %v3275 = vpack.c.b16 %v3225, %v3224
    %v3276 = vpack.c.b16 %v3227, %v3226
    %v3277 = vpack.c.b16 %v3229, %v3228
    %v3278 = vpack.c.b16 %v3231, %v3230
    %v3279 = vpack.c.b16 %v3233, %v3232
    %v3280 = vpack.c.b16 %v3235, %v3234
    %v3281 = vpack.c.b16 %v3237, %v3236
    %v3282 = vpack.c.b16 %v3239, %v3238
    %v3283 = vpack.c.b16 %v3241, %v3240
    %v3284 = vpack.c.b16 %v3243, %v3242
    %v3285 = vpack.c.b16 %v3245, %v3244
    %v3286 = vpack.c.b16 %v3247, %v3246
    %v3287 = vpack.c.b16 %v3249, %v3248
    %v3288 = vpack.c.b16 %v3251, %v3250
    %v3289 = vpack.c.b16 %v3253, %v3252
    %v3290 = vpack.c.b16 %v3255, %v3254
    %v3291 = vpack.c.b16 %v3257, %v3256
    %v3292 = vpack.c.b16 %v3259, %v3258
    %v3293 = vpack.c.b16 %v3261, %v3260
    %3326 = vmatpush.bf16.msra.mxu0 %v3269
    %3327 = vmatpush.bf16.msra.mxu0 %v3268
    %3328 = vmatpush.bf16.msra.mxu0 %v3267
    %3329 = vmatpush.bf16.msra.mxu0 %v3266
    %3330 = vmatpush.bf16.msra.mxu0 %v3265
    %3331 = vmatpush.bf16.msra.mxu0 %v3264
    %3332 = vmatpush.bf16.msra.mxu0 %v3263
    %3333 = vmatpush.bf16.msra.mxu0 %v3262
    %3334 = vmatmul.bf16.gmra.mxu0 %v3062
    %v3335 = vpop.f32.mrf.mxu0
    %v3336 = vadd.f32 %v3132, %v3335
    %v3337 = vpop.f32.mrf.mxu0
    %3338 = vdwg.mxu0
    %3339 = vmatpush.bf16.msra.mxu0 %v3277
    %3340 = vmatpush.bf16.msra.mxu0 %v3276
    %3341 = vmatpush.bf16.msra.mxu0 %v3275
    %3342 = vmatpush.bf16.msra.mxu0 %v3274
    %3343 = vmatpush.bf16.msra.mxu0 %v3273
    %3344 = vmatpush.bf16.msra.mxu0 %v3272
    %3345 = vmatpush.bf16.msra.mxu0 %v3271
    %3346 = vmatpush.bf16.msra.mxu0 %v3270
    %3347 = vmatmul.bf16.gmra.mxu0 %v3063
    %v3348 = vpop.f32.mrf.mxu0
    %v3349 = vadd.f32 %v3336, %v3348
    %v3350 = vpop.f32.mrf.mxu0
    %3351 = vdwg.mxu0
    %3352 = vmatpush.bf16.msra.mxu0 %v3285
    %3353 = vmatpush.bf16.msra.mxu0 %v3284
    %3354 = vmatpush.bf16.msra.mxu0 %v3283
    %3355 = vmatpush.bf16.msra.mxu0 %v3282
    %3356 = vmatpush.bf16.msra.mxu0 %v3281
    %3357 = vmatpush.bf16.msra.mxu0 %v3280
    %3358 = vmatpush.bf16.msra.mxu0 %v3279
    %3359 = vmatpush.bf16.msra.mxu0 %v3278
    %3360 = vmatmul.bf16.gmra.mxu0 %v3064
    %v3361 = vpop.f32.mrf.mxu0
    %v3362 = vadd.f32 %v3349, %v3361
    %v3363 = vpop.f32.mrf.mxu0
    %3364 = vdwg.mxu0
    %3365 = vmatpush.bf16.msra.mxu0 %v3293
    %3366 = vmatpush.bf16.msra.mxu0 %v3292
    %3367 = vmatpush.bf16.msra.mxu0 %v3291
    %3368 = vmatpush.bf16.msra.mxu0 %v3290
    %3369 = vmatpush.bf16.msra.mxu0 %v3289
    %3370 = vmatpush.bf16.msra.mxu0 %v3288
    %3371 = vmatpush.bf16.msra.mxu0 %v3287
    %3372 = vmatpush.bf16.msra.mxu0 %v3286
    %3373 = vmatmul.bf16.gmra.mxu0 %v3065
    %v3374 = vpop.f32.mrf.mxu0
    %v3375 = vadd.f32 %v3362, %v3374
    %v3376 = vpop.f32.mrf.mxu0
    %3377 = vdwg.mxu0
    %v3378 = vsub.f32 0.0, %v3375
    %v3379 = vmul.f32 %v3378, 1.442695
    %v3380 = vpow.pop %v3379
    %v3381 = vadd.f32 %v3380, 1.0
    %v3382 = vrcp.pop %v3381
    %3383 = vst [vmem:[#allocation2] sm:$0xff] %v1751
    %3384 = vst [vmem:[#allocation4] sm:$0xff] %v1809
    %3385 = vst [vmem:[#allocation6] sm:$0xff] %v1812
    %3386 = vst [vmem:[#allocation7] sm:$0xff] %v3382
    // Predicated region
    $region58: #{vae1_forward.1} parent=1 // pred_check
      _
    $region59: #{vae1_forward.1} parent=1 // pred_check_branch
      %3388 = sbr.rel (0) target = $region61
    $region60: #{vae1_forward.1} parent=1 // pred_region
      %3390 = vsyncadd [#allocation3], 0
      %s3392 = sshll.u32 [#allocation2], 4
      %s3393 = int_to_ptr.vmem [resolvable:$true] %s3392
      %s3394 = sshll.u32 %s14, 4
      %s3395 = int_to_ptr.hbm [resolvable:$true] %s3394
      %3397 = dma.vmem_to_hbm [thread:$0]  %s3393, 128, %s3395, [#allocation3]
    $region61: #{vae1_forward.1} parent=1 // pred_fallthru
      _
    // Predicated region
    $region62: #{vae1_forward.1} parent=1 // pred_check
      _
    $region63: #{vae1_forward.1} parent=1 // pred_check_branch
      %3399 = sbr.rel (0) target = $region65
    $region64: #{vae1_forward.1} parent=1 // pred_region
      %3401 = vsyncadd [#allocation5], 0
      %s3403 = sshll.u32 [#allocation4], 4
      %s3404 = int_to_ptr.vmem [resolvable:$true] %s3403
      %s3405 = sshll.u32 %s15, 4
      %s3406 = int_to_ptr.hbm [resolvable:$true] %s3405
      %3408 = dma.vmem_to_hbm [thread:$0]  %s3404, 128, %s3406, [#allocation5]
    $region65: #{vae1_forward.1} parent=1 // pred_fallthru
      _
    // Predicated region
    $region66: #{vae1_forward.1} parent=1 // pred_check
      _
    $region67: #{vae1_forward.1} parent=1 // pred_check_branch
      %3410 = sbr.rel (0) target = $region69
    $region68: #{vae1_forward.1} parent=1 // pred_region
      %3412 = vsyncadd [#allocation5], 0
      %s3414 = sshll.u32 [#allocation6], 4
      %s3415 = int_to_ptr.vmem [resolvable:$true] %s3414
      %s3416 = sshll.u32 %s16, 4
      %s3417 = int_to_ptr.hbm [resolvable:$true] %s3416
      %3419 = dma.vmem_to_hbm [thread:$0]  %s3415, 128, %s3417, [#allocation5]
    $region69: #{vae1_forward.1} parent=1 // pred_fallthru
      _
    // Predicated region
    $region70: #{vae1_forward.1} parent=1 // pred_check
      _
    $region71: #{vae1_forward.1} parent=1 // pred_check_branch
      %3421 = sbr.rel (0) target = $region73
    $region72: #{vae1_forward.1} parent=1 // pred_region
      %3423 = vsyncadd [#allocation8], 0
      %s3425 = sshll.u32 [#allocation7], 4
      %s3426 = int_to_ptr.vmem [resolvable:$true] %s3425
      %s3427 = sshll.u32 %s17, 4
      %s3428 = int_to_ptr.hbm [resolvable:$true] %s3427
      %3430 = dma.vmem_to_hbm [thread:$0]  %s3426, 128, %s3428, [#allocation8]
    $region73: #{vae1_forward.1} parent=1 // pred_fallthru
      _
    // Predicated region
    $region74: #{vae1_forward.1} parent=1 // pred_check
      _
    $region75: #{vae1_forward.1} parent=1 // pred_check_branch
      %3432 = sbr.rel (0) target = $region77
    $region76: #{vae1_forward.1} parent=1 // pred_region
      %3434 = dma.done [#allocation3], 128
    $region77: #{vae1_forward.1} parent=1 // pred_fallthru
      _
    // Predicated region
    $region78: #{vae1_forward.1} parent=1 // pred_check
      _
    $region79: #{vae1_forward.1} parent=1 // pred_check_branch
      %3436 = sbr.rel (0) target = $region81
    $region80: #{vae1_forward.1} parent=1 // pred_region
      %3438 = dma.done [#allocation5], 128
    $region81: #{vae1_forward.1} parent=1 // pred_fallthru
      _
    // Predicated region
    $region82: #{vae1_forward.1} parent=1 // pred_check
      _
    $region83: #{vae1_forward.1} parent=1 // pred_check_branch
      %3440 = sbr.rel (0) target = $region85
    $region84: #{vae1_forward.1} parent=1 // pred_region
      %3442 = dma.done [#allocation5], 128
    $region85: #{vae1_forward.1} parent=1 // pred_fallthru
      _
    // Predicated region
    $region86: #{vae1_forward.1} parent=1 // pred_check
      _
    $region87: #{vae1_forward.1} parent=1 // pred_check_branch
      %3444 = sbr.rel (0) target = $region89
    $region88: #{vae1_forward.1} parent=1 // pred_region
      %3446 = dma.done [#allocation8], 128
    $region89: #{vae1_forward.1} parent=1 // pred_fallthru
      _
    %3447 = vsyncpa [#allocation3], 1
    %3448 = vsyncpa [#allocation5], 1
    %3449 = vsyncpa [#allocation8], 1

</llo_original>
